<compile_context>
chip_gen: v7x
topology: tpu7x:2x2x1
jax: 0.10.0
libtpu: 0.0.40
codegen_flags: <defaults>
</compile_context>

<pallas_src>
import functools

import jax
import jax.numpy as jnp
from jax.experimental import pallas as pl
from jax.experimental.pallas import tpu as pltpu

BN_EPS = 1e-5
LANE_PAD = 128  # lane-dense output width (scores padded to a full vreg lane group)


# ---------------------------------------------------------------- kernel -----
def _gine_fused_kernel(*refs, n_layers):
    out_ref = refs[-1]
    in_refs = refs[:-1]
    h0_ref, adj_ref, ssrc_ref, sdst_ref, emb_w_ref, emb_b_ref = in_refs[:6]
    gin_refs = in_refs[6:6 + 10 * n_layers]
    pred_refs = in_refs[6 + 10 * n_layers:]

    def mm(a_f32, w_ref_or_arr):
        w = w_ref_or_arr[...] if hasattr(w_ref_or_arr, "at") else w_ref_or_arr
        return jnp.dot(a_f32.astype(jnp.bfloat16), w.astype(jnp.bfloat16),
                       preferred_element_type=jnp.float32)

    def bn_relu(x, g_ref, b_ref):
        # nn.BatchNorm1d, training-mode forward: batch statistics, biased variance.
        mu = jnp.mean(x, axis=0, keepdims=True)
        var = jnp.mean((x - mu) * (x - mu), axis=0, keepdims=True)
        y = (x - mu) * jax.lax.rsqrt(var + BN_EPS) * g_ref[...] + b_ref[...]
        return jnp.maximum(y, 0.0)

    adj_b = adj_ref[...].astype(jnp.bfloat16)     # [N, N]   A[dst, src]
    ssrc_b = ssrc_ref[...].astype(jnp.bfloat16)   # [E, N]   one-hot(src)
    sdst_b = sdst_ref[...].astype(jnp.bfloat16)   # [E, N]   one-hot(dst)

    # embedding_h
    h = mm(h0_ref[...], emb_w_ref) + emb_b_ref[...]            # [N, H] f32

    def pred_accum(h_f32, j, acc):
        # prediction[j](cat([h[src], h[dst]])) with the 2H->H weight split in two.
        w0s_ref, w0d_ref, b0_ref, w1p_ref, b1p_ref = pred_refs[5 * j:5 * j + 5]
        h_b = h_f32.astype(jnp.bfloat16)
        e_src = jnp.dot(ssrc_b, h_b, preferred_element_type=jnp.float32)  # h[src]
        e_dst = jnp.dot(sdst_b, h_b, preferred_element_type=jnp.float32)  # h[dst]
        t = mm(e_src, w0s_ref) + mm(e_dst, w0d_ref) + b0_ref[...]
        t = jnp.maximum(t, 0.0)
        return acc + mm(t, w1p_ref) + b1p_ref[...]              # [E, LANE_PAD]

    score = jnp.zeros(out_ref.shape, jnp.float32)
    score = pred_accum(h, 0, score)

    for i in range(n_layers):
        (w0_ref, b0_ref, bn0g_ref, bn0b_ref, w1_ref, b1_ref,
         abng_ref, abnb_ref, obng_ref, obnb_ref) = gin_refs[10 * i:10 * i + 10]
        # GINConv sum aggregation, eps = 0: (1+eps)*h + A @ h
        z = jnp.dot(adj_b, h.astype(jnp.bfloat16),
                    preferred_element_type=jnp.float32) + h
        # MLP (depth 2): relu(bn0(linear0(z))); linear1
        z = mm(z, w0_ref) + b0_ref[...]
        z = bn_relu(z, bn0g_ref, bn0b_ref)
        z = mm(z, w1_ref) + b1_ref[...]
        # ApplyNodeFunc: bn + relu
        z = bn_relu(z, abng_ref, abnb_ref)
        # GINEdge: batch_norms[i] + relu
        h = bn_relu(z, obng_ref, obnb_ref)
        score = pred_accum(h, i + 1, score)

    out_ref[...] = score


# -------------------------------------------------------------- parameters ---
def init_params(key, in_features, hidden, n_classes, n_layers, lane_pad=LANE_PAD):
    keys = iter(jax.random.split(key, 256))

    def lin(in_d, out_d):
        w = jax.random.normal(next(keys), (in_d, out_d), jnp.float32) / jnp.sqrt(
            jnp.float32(in_d))
        b = jax.random.normal(next(keys), (1, out_d), jnp.float32) * 0.01
        return w, b

    def bn(d):  # PyTorch default BN init: gamma=1, beta=0
        return jnp.ones((1, d), jnp.float32), jnp.zeros((1, d), jnp.float32)

    params = {}
    params["emb_w"], params["emb_b"] = lin(in_features, hidden)
    params["gin"] = []
    for _ in range(n_layers):
        p = {}
        p["mlp_w0"], p["mlp_b0"] = lin(hidden, hidden)   # MLP linears[0]
        p["mlp_bn_g"], p["mlp_bn_b"] = bn(hidden)        # MLP batch_norms[0]
        p["mlp_w1"], p["mlp_b1"] = lin(hidden, hidden)   # MLP linears[1] (output)
        p["apply_bn_g"], p["apply_bn_b"] = bn(hidden)    # ApplyNodeFunc.bn
        p["out_bn_g"], p["out_bn_b"] = bn(hidden)        # GINEdge.batch_norms[i]
        params["gin"].append(p)
    params["pred"] = []
    for _ in range(n_layers + 1):
        pp = {}
        w0, b0 = lin(2 * hidden, hidden)                 # nn.Linear(2H, H)
        pp["w0_src"] = w0[:hidden]                       # rows acting on h[src]
        pp["w0_dst"] = w0[hidden:]                       # rows acting on h[dst]
        pp["b0"] = b0
        w1, b1 = lin(hidden, n_classes)                  # nn.Linear(H, n_classes)
        pp["w1_pad"] = jnp.zeros((hidden, lane_pad), jnp.float32).at[:, :n_classes].set(w1)
        pp["b1_pad"] = jnp.zeros((1, lane_pad), jnp.float32).at[:, :n_classes].set(b1)
        params["pred"].append(pp)
    return params


# ----------------------------------------------------------------- forward ---
def gine_forward(params, h0, adj, s_src, s_dst, n_layers, n_classes):
    flat = [h0, adj, s_src, s_dst, params["emb_w"], params["emb_b"]]
    for p in params["gin"]:
        flat += [p["mlp_w0"], p["mlp_b0"], p["mlp_bn_g"], p["mlp_bn_b"],
                 p["mlp_w1"], p["mlp_b1"], p["apply_bn_g"], p["apply_bn_b"],
                 p["out_bn_g"], p["out_bn_b"]]
    for pp in params["pred"]:
        flat += [pp["w0_src"], pp["w0_dst"], pp["b0"], pp["w1_pad"], pp["b1_pad"]]

    e = s_src.shape[0]
    vmem = pl.BlockSpec(memory_space=pltpu.MemorySpace.VMEM)
    score_pad = pl.pallas_call(
        functools.partial(_gine_fused_kernel, n_layers=n_layers),
        out_shape=jax.ShapeDtypeStruct((e, LANE_PAD), jnp.float32),
        in_specs=[vmem] * len(flat),
        out_specs=vmem,
    )(*flat)
    return score_pad[:, :n_classes]


# -------------------------------------------------------------------- main ---
if __name__ == "__main__":
    N, IN_F, HID, NCLS, NLAYERS = 16, 8, 32, 4, 2

    key = jax.random.PRNGKey(0)
    kfeat, kparam = jax.random.split(key)

    # node features (g.ndata['feat'])
    h0 = jax.random.normal(kfeat, (N, IN_F), jnp.float32)

    # deterministic directed graph: node i -> (i+1)%N and (i+2)%N  => E = 32 edges
    src = jnp.concatenate([jnp.arange(N), jnp.arange(N)])
    dst = jnp.concatenate([(jnp.arange(N) + 1) % N, (jnp.arange(N) + 2) % N])
    E = int(src.shape[0])

    adj = jnp.zeros((N, N), jnp.float32).at[dst, src].add(1.0)   # A[dst, src]
    s_src = jax.nn.one_hot(src, N, dtype=jnp.float32)            # [E, N] gather h[src]
    s_dst = jax.nn.one_hot(dst, N, dtype=jnp.float32)            # [E, N] gather h[dst]

    params = init_params(kparam, IN_F, HID, NCLS, NLAYERS)

    out = gine_forward(params, h0, adj, s_src, s_dst, NLAYERS, NCLS)
    out = jax.block_until_ready(out)
    assert out.shape == (E, NCLS) and out.dtype == jnp.float32
    assert bool(jnp.all(jnp.isfinite(out)))
    print("KERNEL_OK")
</pallas_src>

<mosaic_0001>
module attributes {stable_mosaic.version = 11 : i64} {
  func.func @_gine_fused_kernel(%arg0: memref<16x8xf32, #tpu.memory_space<vmem>>, %arg1: memref<16x16xf32, #tpu.memory_space<vmem>>, %arg2: memref<32x16xf32, #tpu.memory_space<vmem>>, %arg3: memref<32x16xf32, #tpu.memory_space<vmem>>, %arg4: memref<8x32xf32, #tpu.memory_space<vmem>>, %arg5: memref<1x32xf32, #tpu.memory_space<vmem>>, %arg6: memref<32x32xf32, #tpu.memory_space<vmem>>, %arg7: memref<1x32xf32, #tpu.memory_space<vmem>>, %arg8: memref<1x32xf32, #tpu.memory_space<vmem>>, %arg9: memref<1x32xf32, #tpu.memory_space<vmem>>, %arg10: memref<32x32xf32, #tpu.memory_space<vmem>>, %arg11: memref<1x32xf32, #tpu.memory_space<vmem>>, %arg12: memref<1x32xf32, #tpu.memory_space<vmem>>, %arg13: memref<1x32xf32, #tpu.memory_space<vmem>>, %arg14: memref<1x32xf32, #tpu.memory_space<vmem>>, %arg15: memref<1x32xf32, #tpu.memory_space<vmem>>, %arg16: memref<32x32xf32, #tpu.memory_space<vmem>>, %arg17: memref<1x32xf32, #tpu.memory_space<vmem>>, %arg18: memref<1x32xf32, #tpu.memory_space<vmem>>, %arg19: memref<1x32xf32, #tpu.memory_space<vmem>>, %arg20: memref<32x32xf32, #tpu.memory_space<vmem>>, %arg21: memref<1x32xf32, #tpu.memory_space<vmem>>, %arg22: memref<1x32xf32, #tpu.memory_space<vmem>>, %arg23: memref<1x32xf32, #tpu.memory_space<vmem>>, %arg24: memref<1x32xf32, #tpu.memory_space<vmem>>, %arg25: memref<1x32xf32, #tpu.memory_space<vmem>>, %arg26: memref<32x32xf32, #tpu.memory_space<vmem>>, %arg27: memref<32x32xf32, #tpu.memory_space<vmem>>, %arg28: memref<1x32xf32, #tpu.memory_space<vmem>>, %arg29: memref<32x128xf32, #tpu.memory_space<vmem>>, %arg30: memref<1x128xf32, #tpu.memory_space<vmem>>, %arg31: memref<32x32xf32, #tpu.memory_space<vmem>>, %arg32: memref<32x32xf32, #tpu.memory_space<vmem>>, %arg33: memref<1x32xf32, #tpu.memory_space<vmem>>, %arg34: memref<32x128xf32, #tpu.memory_space<vmem>>, %arg35: memref<1x128xf32, #tpu.memory_space<vmem>>, %arg36: memref<32x32xf32, #tpu.memory_space<vmem>>, %arg37: memref<32x32xf32, #tpu.memory_space<vmem>>, %arg38: memref<1x32xf32, #tpu.memory_space<vmem>>, %arg39: memref<32x128xf32, #tpu.memory_space<vmem>>, %arg40: memref<1x128xf32, #tpu.memory_space<vmem>>, %arg41: memref<32x128xf32, #tpu.memory_space<vmem>>) attributes {dimension_semantics = [], scalar_prefetch = 0 : i64, scratch_operands = 0 : i64, tpu.core_type = #tpu.core_type<tc>} {
    %c0 = arith.constant 0 : index
    %c0_0 = arith.constant 0 : index
    %0 = vector.load %arg1[%c0, %c0_0] : memref<16x16xf32, #tpu.memory_space<vmem>>, vector<16x16xf32>
    %1 = arith.truncf %0 : vector<16x16xf32> to vector<16x16xbf16>
    %c0_1 = arith.constant 0 : index
    %c0_2 = arith.constant 0 : index
    %2 = vector.load %arg2[%c0_1, %c0_2] : memref<32x16xf32, #tpu.memory_space<vmem>>, vector<32x16xf32>
    %3 = arith.truncf %2 : vector<32x16xf32> to vector<32x16xbf16>
    %c0_3 = arith.constant 0 : index
    %c0_4 = arith.constant 0 : index
    %4 = vector.load %arg3[%c0_3, %c0_4] : memref<32x16xf32, #tpu.memory_space<vmem>>, vector<32x16xf32>
    %5 = arith.truncf %4 : vector<32x16xf32> to vector<32x16xbf16>
    %c0_5 = arith.constant 0 : index
    %c0_6 = arith.constant 0 : index
    %6 = vector.load %arg0[%c0_5, %c0_6] : memref<16x8xf32, #tpu.memory_space<vmem>>, vector<16x8xf32>
    %c0_7 = arith.constant 0 : index
    %c0_8 = arith.constant 0 : index
    %7 = vector.load %arg4[%c0_7, %c0_8] : memref<8x32xf32, #tpu.memory_space<vmem>>, vector<8x32xf32>
    %8 = arith.truncf %6 : vector<16x8xf32> to vector<16x8xbf16>
    %9 = arith.truncf %7 : vector<8x32xf32> to vector<8x32xbf16>
    %cst = arith.constant dense<0.000000e+00> : vector<16x32xf32>
    %10 = tpu.matmul %8, %9, %cst {dimension_numbers = #tpu.dot_dimension_numbers<[1], [0], [0], [1], [0, 0, 1, 1], [], []>} : vector<16x8xbf16>, vector<8x32xbf16>, vector<16x32xf32> -> vector<16x32xf32>
    %c0_9 = arith.constant 0 : index
    %c0_10 = arith.constant 0 : index
    %11 = vector.load %arg5[%c0_9, %c0_10] : memref<1x32xf32, #tpu.memory_space<vmem>>, vector<1x32xf32>
    %12 = vector.broadcast %11 : vector<1x32xf32> to vector<16x32xf32>
    %13 = arith.addf %10, %12 : vector<16x32xf32>
    %cst_11 = arith.constant 0.000000e+00 : f32
    %14 = vector.broadcast %cst_11 : f32 to vector<32x128xf32>
    %15 = arith.truncf %13 : vector<16x32xf32> to vector<16x32xbf16>
    %cst_12 = arith.constant dense<0.000000e+00> : vector<32x32xf32>
    %16 = tpu.matmul %3, %15, %cst_12 {dimension_numbers = #tpu.dot_dimension_numbers<[1], [0], [0], [1], [0, 0, 1, 1], [], []>} : vector<32x16xbf16>, vector<16x32xbf16>, vector<32x32xf32> -> vector<32x32xf32>
    %cst_13 = arith.constant dense<0.000000e+00> : vector<32x32xf32>
    %17 = tpu.matmul %5, %15, %cst_13 {dimension_numbers = #tpu.dot_dimension_numbers<[1], [0], [0], [1], [0, 0, 1, 1], [], []>} : vector<32x16xbf16>, vector<16x32xbf16>, vector<32x32xf32> -> vector<32x32xf32>
    %c0_14 = arith.constant 0 : index
    %c0_15 = arith.constant 0 : index
    %18 = vector.load %arg26[%c0_14, %c0_15] : memref<32x32xf32, #tpu.memory_space<vmem>>, vector<32x32xf32>
    %19 = arith.truncf %16 : vector<32x32xf32> to vector<32x32xbf16>
    %20 = arith.truncf %18 : vector<32x32xf32> to vector<32x32xbf16>
    %cst_16 = arith.constant dense<0.000000e+00> : vector<32x32xf32>
    %21 = tpu.matmul %19, %20, %cst_16 {dimension_numbers = #tpu.dot_dimension_numbers<[1], [0], [0], [1], [0, 0, 1, 1], [], []>} : vector<32x32xbf16>, vector<32x32xbf16>, vector<32x32xf32> -> vector<32x32xf32>
    %c0_17 = arith.constant 0 : index
    %c0_18 = arith.constant 0 : index
    %22 = vector.load %arg27[%c0_17, %c0_18] : memref<32x32xf32, #tpu.memory_space<vmem>>, vector<32x32xf32>
    %23 = arith.truncf %17 : vector<32x32xf32> to vector<32x32xbf16>
    %24 = arith.truncf %22 : vector<32x32xf32> to vector<32x32xbf16>
    %cst_19 = arith.constant dense<0.000000e+00> : vector<32x32xf32>
    %25 = tpu.matmul %23, %24, %cst_19 {dimension_numbers = #tpu.dot_dimension_numbers<[1], [0], [0], [1], [0, 0, 1, 1], [], []>} : vector<32x32xbf16>, vector<32x32xbf16>, vector<32x32xf32> -> vector<32x32xf32>
    %26 = arith.addf %21, %25 : vector<32x32xf32>
    %c0_20 = arith.constant 0 : index
    %c0_21 = arith.constant 0 : index
    %27 = vector.load %arg28[%c0_20, %c0_21] : memref<1x32xf32, #tpu.memory_space<vmem>>, vector<1x32xf32>
    %28 = vector.broadcast %27 : vector<1x32xf32> to vector<32x32xf32>
    %29 = arith.addf %26, %28 : vector<32x32xf32>
    %cst_22 = arith.constant 0.000000e+00 : f32
    %30 = vector.broadcast %cst_22 : f32 to vector<32x32xf32>
    %31 = arith.maximumf %29, %30 : vector<32x32xf32>
    %c0_23 = arith.constant 0 : index
    %c0_24 = arith.constant 0 : index
    %32 = vector.load %arg29[%c0_23, %c0_24] : memref<32x128xf32, #tpu.memory_space<vmem>>, vector<32x128xf32>
    %33 = arith.truncf %31 : vector<32x32xf32> to vector<32x32xbf16>
    %34 = arith.truncf %32 : vector<32x128xf32> to vector<32x128xbf16>
    %cst_25 = arith.constant dense<0.000000e+00> : vector<32x128xf32>
    %35 = tpu.matmul %33, %34, %cst_25 {dimension_numbers = #tpu.dot_dimension_numbers<[1], [0], [0], [1], [0, 0, 1, 1], [], []>} : vector<32x32xbf16>, vector<32x128xbf16>, vector<32x128xf32> -> vector<32x128xf32>
    %36 = arith.addf %14, %35 : vector<32x128xf32>
    %c0_26 = arith.constant 0 : index
    %c0_27 = arith.constant 0 : index
    %37 = vector.load %arg30[%c0_26, %c0_27] : memref<1x128xf32, #tpu.memory_space<vmem>>, vector<1x128xf32>
    %38 = vector.broadcast %37 : vector<1x128xf32> to vector<32x128xf32>
    %39 = arith.addf %36, %38 : vector<32x128xf32>
    %40 = arith.truncf %13 : vector<16x32xf32> to vector<16x32xbf16>
    %cst_28 = arith.constant dense<0.000000e+00> : vector<16x32xf32>
    %41 = tpu.matmul %1, %40, %cst_28 {dimension_numbers = #tpu.dot_dimension_numbers<[1], [0], [0], [1], [0, 0, 1, 1], [], []>} : vector<16x16xbf16>, vector<16x32xbf16>, vector<16x32xf32> -> vector<16x32xf32>
    %42 = arith.addf %41, %13 : vector<16x32xf32>
    %c0_29 = arith.constant 0 : index
    %c0_30 = arith.constant 0 : index
    %43 = vector.load %arg6[%c0_29, %c0_30] : memref<32x32xf32, #tpu.memory_space<vmem>>, vector<32x32xf32>
    %44 = arith.truncf %42 : vector<16x32xf32> to vector<16x32xbf16>
    %45 = arith.truncf %43 : vector<32x32xf32> to vector<32x32xbf16>
    %cst_31 = arith.constant dense<0.000000e+00> : vector<16x32xf32>
    %46 = tpu.matmul %44, %45, %cst_31 {dimension_numbers = #tpu.dot_dimension_numbers<[1], [0], [0], [1], [0, 0, 1, 1], [], []>} : vector<16x32xbf16>, vector<32x32xbf16>, vector<16x32xf32> -> vector<16x32xf32>
    %c0_32 = arith.constant 0 : index
    %c0_33 = arith.constant 0 : index
    %47 = vector.load %arg7[%c0_32, %c0_33] : memref<1x32xf32, #tpu.memory_space<vmem>>, vector<1x32xf32>
    %48 = vector.broadcast %47 : vector<1x32xf32> to vector<16x32xf32>
    %49 = arith.addf %46, %48 : vector<16x32xf32>
    %cst_34 = arith.constant dense<0.000000e+00> : vector<32xf32>
    %50 = vector.multi_reduction <add>, %49, %cst_34 [0] : vector<16x32xf32> to vector<32xf32>
    %51 = vector.shape_cast %50 : vector<32xf32> to vector<1x32xf32>
    %cst_35 = arith.constant 1.600000e+01 : f32
    %52 = vector.broadcast %cst_35 : f32 to vector<1x32xf32>
    %53 = arith.divf %51, %52 : vector<1x32xf32>
    %54 = vector.broadcast %53 : vector<1x32xf32> to vector<16x32xf32>
    %55 = arith.subf %49, %54 : vector<16x32xf32>
    %56 = vector.broadcast %53 : vector<1x32xf32> to vector<16x32xf32>
    %57 = arith.subf %49, %56 : vector<16x32xf32>
    %58 = arith.mulf %55, %57 : vector<16x32xf32>
    %cst_36 = arith.constant dense<0.000000e+00> : vector<32xf32>
    %59 = vector.multi_reduction <add>, %58, %cst_36 [0] : vector<16x32xf32> to vector<32xf32>
    %60 = vector.shape_cast %59 : vector<32xf32> to vector<1x32xf32>
    %cst_37 = arith.constant 1.600000e+01 : f32
    %61 = vector.broadcast %cst_37 : f32 to vector<1x32xf32>
    %62 = arith.divf %60, %61 : vector<1x32xf32>
    %63 = vector.broadcast %53 : vector<1x32xf32> to vector<16x32xf32>
    %64 = arith.subf %49, %63 : vector<16x32xf32>
    %cst_38 = arith.constant 9.99999974E-6 : f32
    %65 = vector.broadcast %cst_38 : f32 to vector<1x32xf32>
    %66 = arith.addf %62, %65 : vector<1x32xf32>
    %67 = math.rsqrt %66 : vector<1x32xf32>
    %68 = vector.broadcast %67 : vector<1x32xf32> to vector<16x32xf32>
    %69 = arith.mulf %64, %68 : vector<16x32xf32>
    %c0_39 = arith.constant 0 : index
    %c0_40 = arith.constant 0 : index
    %70 = vector.load %arg8[%c0_39, %c0_40] : memref<1x32xf32, #tpu.memory_space<vmem>>, vector<1x32xf32>
    %71 = vector.broadcast %70 : vector<1x32xf32> to vector<16x32xf32>
    %72 = arith.mulf %69, %71 : vector<16x32xf32>
    %c0_41 = arith.constant 0 : index
    %c0_42 = arith.constant 0 : index
    %73 = vector.load %arg9[%c0_41, %c0_42] : memref<1x32xf32, #tpu.memory_space<vmem>>, vector<1x32xf32>
    %74 = vector.broadcast %73 : vector<1x32xf32> to vector<16x32xf32>
    %75 = arith.addf %72, %74 : vector<16x32xf32>
    %cst_43 = arith.constant 0.000000e+00 : f32
    %76 = vector.broadcast %cst_43 : f32 to vector<16x32xf32>
    %77 = arith.maximumf %75, %76 : vector<16x32xf32>
    %c0_44 = arith.constant 0 : index
    %c0_45 = arith.constant 0 : index
    %78 = vector.load %arg10[%c0_44, %c0_45] : memref<32x32xf32, #tpu.memory_space<vmem>>, vector<32x32xf32>
    %79 = arith.truncf %77 : vector<16x32xf32> to vector<16x32xbf16>
    %80 = arith.truncf %78 : vector<32x32xf32> to vector<32x32xbf16>
    %cst_46 = arith.constant dense<0.000000e+00> : vector<16x32xf32>
    %81 = tpu.matmul %79, %80, %cst_46 {dimension_numbers = #tpu.dot_dimension_numbers<[1], [0], [0], [1], [0, 0, 1, 1], [], []>} : vector<16x32xbf16>, vector<32x32xbf16>, vector<16x32xf32> -> vector<16x32xf32>
    %c0_47 = arith.constant 0 : index
    %c0_48 = arith.constant 0 : index
    %82 = vector.load %arg11[%c0_47, %c0_48] : memref<1x32xf32, #tpu.memory_space<vmem>>, vector<1x32xf32>
    %83 = vector.broadcast %82 : vector<1x32xf32> to vector<16x32xf32>
    %84 = arith.addf %81, %83 : vector<16x32xf32>
    %cst_49 = arith.constant dense<0.000000e+00> : vector<32xf32>
    %85 = vector.multi_reduction <add>, %84, %cst_49 [0] : vector<16x32xf32> to vector<32xf32>
    %86 = vector.shape_cast %85 : vector<32xf32> to vector<1x32xf32>
    %cst_50 = arith.constant 1.600000e+01 : f32
    %87 = vector.broadcast %cst_50 : f32 to vector<1x32xf32>
    %88 = arith.divf %86, %87 : vector<1x32xf32>
    %89 = vector.broadcast %88 : vector<1x32xf32> to vector<16x32xf32>
    %90 = arith.subf %84, %89 : vector<16x32xf32>
    %91 = vector.broadcast %88 : vector<1x32xf32> to vector<16x32xf32>
    %92 = arith.subf %84, %91 : vector<16x32xf32>
    %93 = arith.mulf %90, %92 : vector<16x32xf32>
    %cst_51 = arith.constant dense<0.000000e+00> : vector<32xf32>
    %94 = vector.multi_reduction <add>, %93, %cst_51 [0] : vector<16x32xf32> to vector<32xf32>
    %95 = vector.shape_cast %94 : vector<32xf32> to vector<1x32xf32>
    %cst_52 = arith.constant 1.600000e+01 : f32
    %96 = vector.broadcast %cst_52 : f32 to vector<1x32xf32>
    %97 = arith.divf %95, %96 : vector<1x32xf32>
    %98 = vector.broadcast %88 : vector<1x32xf32> to vector<16x32xf32>
    %99 = arith.subf %84, %98 : vector<16x32xf32>
    %cst_53 = arith.constant 9.99999974E-6 : f32
    %100 = vector.broadcast %cst_53 : f32 to vector<1x32xf32>
    %101 = arith.addf %97, %100 : vector<1x32xf32>
    %102 = math.rsqrt %101 : vector<1x32xf32>
    %103 = vector.broadcast %102 : vector<1x32xf32> to vector<16x32xf32>
    %104 = arith.mulf %99, %103 : vector<16x32xf32>
    %c0_54 = arith.constant 0 : index
    %c0_55 = arith.constant 0 : index
    %105 = vector.load %arg12[%c0_54, %c0_55] : memref<1x32xf32, #tpu.memory_space<vmem>>, vector<1x32xf32>
    %106 = vector.broadcast %105 : vector<1x32xf32> to vector<16x32xf32>
    %107 = arith.mulf %104, %106 : vector<16x32xf32>
    %c0_56 = arith.constant 0 : index
    %c0_57 = arith.constant 0 : index
    %108 = vector.load %arg13[%c0_56, %c0_57] : memref<1x32xf32, #tpu.memory_space<vmem>>, vector<1x32xf32>
    %109 = vector.broadcast %108 : vector<1x32xf32> to vector<16x32xf32>
    %110 = arith.addf %107, %109 : vector<16x32xf32>
    %cst_58 = arith.constant 0.000000e+00 : f32
    %111 = vector.broadcast %cst_58 : f32 to vector<16x32xf32>
    %112 = arith.maximumf %110, %111 : vector<16x32xf32>
    %cst_59 = arith.constant dense<0.000000e+00> : vector<32xf32>
    %113 = vector.multi_reduction <add>, %112, %cst_59 [0] : vector<16x32xf32> to vector<32xf32>
    %114 = vector.shape_cast %113 : vector<32xf32> to vector<1x32xf32>
    %cst_60 = arith.constant 1.600000e+01 : f32
    %115 = vector.broadcast %cst_60 : f32 to vector<1x32xf32>
    %116 = arith.divf %114, %115 : vector<1x32xf32>
    %117 = vector.broadcast %116 : vector<1x32xf32> to vector<16x32xf32>
    %118 = arith.subf %112, %117 : vector<16x32xf32>
    %119 = vector.broadcast %116 : vector<1x32xf32> to vector<16x32xf32>
    %120 = arith.subf %112, %119 : vector<16x32xf32>
    %121 = arith.mulf %118, %120 : vector<16x32xf32>
    %cst_61 = arith.constant dense<0.000000e+00> : vector<32xf32>
    %122 = vector.multi_reduction <add>, %121, %cst_61 [0] : vector<16x32xf32> to vector<32xf32>
    %123 = vector.shape_cast %122 : vector<32xf32> to vector<1x32xf32>
    %cst_62 = arith.constant 1.600000e+01 : f32
    %124 = vector.broadcast %cst_62 : f32 to vector<1x32xf32>
    %125 = arith.divf %123, %124 : vector<1x32xf32>
    %126 = vector.broadcast %116 : vector<1x32xf32> to vector<16x32xf32>
    %127 = arith.subf %112, %126 : vector<16x32xf32>
    %cst_63 = arith.constant 9.99999974E-6 : f32
    %128 = vector.broadcast %cst_63 : f32 to vector<1x32xf32>
    %129 = arith.addf %125, %128 : vector<1x32xf32>
    %130 = math.rsqrt %129 : vector<1x32xf32>
    %131 = vector.broadcast %130 : vector<1x32xf32> to vector<16x32xf32>
    %132 = arith.mulf %127, %131 : vector<16x32xf32>
    %c0_64 = arith.constant 0 : index
    %c0_65 = arith.constant 0 : index
    %133 = vector.load %arg14[%c0_64, %c0_65] : memref<1x32xf32, #tpu.memory_space<vmem>>, vector<1x32xf32>
    %134 = vector.broadcast %133 : vector<1x32xf32> to vector<16x32xf32>
    %135 = arith.mulf %132, %134 : vector<16x32xf32>
    %c0_66 = arith.constant 0 : index
    %c0_67 = arith.constant 0 : index
    %136 = vector.load %arg15[%c0_66, %c0_67] : memref<1x32xf32, #tpu.memory_space<vmem>>, vector<1x32xf32>
    %137 = vector.broadcast %136 : vector<1x32xf32> to vector<16x32xf32>
    %138 = arith.addf %135, %137 : vector<16x32xf32>
    %cst_68 = arith.constant 0.000000e+00 : f32
    %139 = vector.broadcast %cst_68 : f32 to vector<16x32xf32>
    %140 = arith.maximumf %138, %139 : vector<16x32xf32>
    %141 = arith.truncf %140 : vector<16x32xf32> to vector<16x32xbf16>
    %cst_69 = arith.constant dense<0.000000e+00> : vector<32x32xf32>
    %142 = tpu.matmul %3, %141, %cst_69 {dimension_numbers = #tpu.dot_dimension_numbers<[1], [0], [0], [1], [0, 0, 1, 1], [], []>} : vector<32x16xbf16>, vector<16x32xbf16>, vector<32x32xf32> -> vector<32x32xf32>
    %cst_70 = arith.constant dense<0.000000e+00> : vector<32x32xf32>
    %143 = tpu.matmul %5, %141, %cst_70 {dimension_numbers = #tpu.dot_dimension_numbers<[1], [0], [0], [1], [0, 0, 1, 1], [], []>} : vector<32x16xbf16>, vector<16x32xbf16>, vector<32x32xf32> -> vector<32x32xf32>
    %c0_71 = arith.constant 0 : index
    %c0_72 = arith.constant 0 : index
    %144 = vector.load %arg31[%c0_71, %c0_72] : memref<32x32xf32, #tpu.memory_space<vmem>>, vector<32x32xf32>
    %145 = arith.truncf %142 : vector<32x32xf32> to vector<32x32xbf16>
    %146 = arith.truncf %144 : vector<32x32xf32> to vector<32x32xbf16>
    %cst_73 = arith.constant dense<0.000000e+00> : vector<32x32xf32>
    %147 = tpu.matmul %145, %146, %cst_73 {dimension_numbers = #tpu.dot_dimension_numbers<[1], [0], [0], [1], [0, 0, 1, 1], [], []>} : vector<32x32xbf16>, vector<32x32xbf16>, vector<32x32xf32> -> vector<32x32xf32>
    %c0_74 = arith.constant 0 : index
    %c0_75 = arith.constant 0 : index
    %148 = vector.load %arg32[%c0_74, %c0_75] : memref<32x32xf32, #tpu.memory_space<vmem>>, vector<32x32xf32>
    %149 = arith.truncf %143 : vector<32x32xf32> to vector<32x32xbf16>
    %150 = arith.truncf %148 : vector<32x32xf32> to vector<32x32xbf16>
    %cst_76 = arith.constant dense<0.000000e+00> : vector<32x32xf32>
    %151 = tpu.matmul %149, %150, %cst_76 {dimension_numbers = #tpu.dot_dimension_numbers<[1], [0], [0], [1], [0, 0, 1, 1], [], []>} : vector<32x32xbf16>, vector<32x32xbf16>, vector<32x32xf32> -> vector<32x32xf32>
    %152 = arith.addf %147, %151 : vector<32x32xf32>
    %c0_77 = arith.constant 0 : index
    %c0_78 = arith.constant 0 : index
    %153 = vector.load %arg33[%c0_77, %c0_78] : memref<1x32xf32, #tpu.memory_space<vmem>>, vector<1x32xf32>
    %154 = vector.broadcast %153 : vector<1x32xf32> to vector<32x32xf32>
    %155 = arith.addf %152, %154 : vector<32x32xf32>
    %cst_79 = arith.constant 0.000000e+00 : f32
    %156 = vector.broadcast %cst_79 : f32 to vector<32x32xf32>
    %157 = arith.maximumf %155, %156 : vector<32x32xf32>
    %c0_80 = arith.constant 0 : index
    %c0_81 = arith.constant 0 : index
    %158 = vector.load %arg34[%c0_80, %c0_81] : memref<32x128xf32, #tpu.memory_space<vmem>>, vector<32x128xf32>
    %159 = arith.truncf %157 : vector<32x32xf32> to vector<32x32xbf16>
    %160 = arith.truncf %158 : vector<32x128xf32> to vector<32x128xbf16>
    %cst_82 = arith.constant dense<0.000000e+00> : vector<32x128xf32>
    %161 = tpu.matmul %159, %160, %cst_82 {dimension_numbers = #tpu.dot_dimension_numbers<[1], [0], [0], [1], [0, 0, 1, 1], [], []>} : vector<32x32xbf16>, vector<32x128xbf16>, vector<32x128xf32> -> vector<32x128xf32>
    %162 = arith.addf %39, %161 : vector<32x128xf32>
    %c0_83 = arith.constant 0 : index
    %c0_84 = arith.constant 0 : index
    %163 = vector.load %arg35[%c0_83, %c0_84] : memref<1x128xf32, #tpu.memory_space<vmem>>, vector<1x128xf32>
    %164 = vector.broadcast %163 : vector<1x128xf32> to vector<32x128xf32>
    %165 = arith.addf %162, %164 : vector<32x128xf32>
    %166 = arith.truncf %140 : vector<16x32xf32> to vector<16x32xbf16>
    %cst_85 = arith.constant dense<0.000000e+00> : vector<16x32xf32>
    %167 = tpu.matmul %1, %166, %cst_85 {dimension_numbers = #tpu.dot_dimension_numbers<[1], [0], [0], [1], [0, 0, 1, 1], [], []>} : vector<16x16xbf16>, vector<16x32xbf16>, vector<16x32xf32> -> vector<16x32xf32>
    %168 = arith.addf %167, %140 : vector<16x32xf32>
    %c0_86 = arith.constant 0 : index
    %c0_87 = arith.constant 0 : index
    %169 = vector.load %arg16[%c0_86, %c0_87] : memref<32x32xf32, #tpu.memory_space<vmem>>, vector<32x32xf32>
    %170 = arith.truncf %168 : vector<16x32xf32> to vector<16x32xbf16>
    %171 = arith.truncf %169 : vector<32x32xf32> to vector<32x32xbf16>
    %cst_88 = arith.constant dense<0.000000e+00> : vector<16x32xf32>
    %172 = tpu.matmul %170, %171, %cst_88 {dimension_numbers = #tpu.dot_dimension_numbers<[1], [0], [0], [1], [0, 0, 1, 1], [], []>} : vector<16x32xbf16>, vector<32x32xbf16>, vector<16x32xf32> -> vector<16x32xf32>
    %c0_89 = arith.constant 0 : index
    %c0_90 = arith.constant 0 : index
    %173 = vector.load %arg17[%c0_89, %c0_90] : memref<1x32xf32, #tpu.memory_space<vmem>>, vector<1x32xf32>
    %174 = vector.broadcast %173 : vector<1x32xf32> to vector<16x32xf32>
    %175 = arith.addf %172, %174 : vector<16x32xf32>
    %cst_91 = arith.constant dense<0.000000e+00> : vector<32xf32>
    %176 = vector.multi_reduction <add>, %175, %cst_91 [0] : vector<16x32xf32> to vector<32xf32>
    %177 = vector.shape_cast %176 : vector<32xf32> to vector<1x32xf32>
    %cst_92 = arith.constant 1.600000e+01 : f32
    %178 = vector.broadcast %cst_92 : f32 to vector<1x32xf32>
    %179 = arith.divf %177, %178 : vector<1x32xf32>
    %180 = vector.broadcast %179 : vector<1x32xf32> to vector<16x32xf32>
    %181 = arith.subf %175, %180 : vector<16x32xf32>
    %182 = vector.broadcast %179 : vector<1x32xf32> to vector<16x32xf32>
    %183 = arith.subf %175, %182 : vector<16x32xf32>
    %184 = arith.mulf %181, %183 : vector<16x32xf32>
    %cst_93 = arith.constant dense<0.000000e+00> : vector<32xf32>
    %185 = vector.multi_reduction <add>, %184, %cst_93 [0] : vector<16x32xf32> to vector<32xf32>
    %186 = vector.shape_cast %185 : vector<32xf32> to vector<1x32xf32>
    %cst_94 = arith.constant 1.600000e+01 : f32
    %187 = vector.broadcast %cst_94 : f32 to vector<1x32xf32>
    %188 = arith.divf %186, %187 : vector<1x32xf32>
    %189 = vector.broadcast %179 : vector<1x32xf32> to vector<16x32xf32>
    %190 = arith.subf %175, %189 : vector<16x32xf32>
    %cst_95 = arith.constant 9.99999974E-6 : f32
    %191 = vector.broadcast %cst_95 : f32 to vector<1x32xf32>
    %192 = arith.addf %188, %191 : vector<1x32xf32>
    %193 = math.rsqrt %192 : vector<1x32xf32>
    %194 = vector.broadcast %193 : vector<1x32xf32> to vector<16x32xf32>
    %195 = arith.mulf %190, %194 : vector<16x32xf32>
    %c0_96 = arith.constant 0 : index
    %c0_97 = arith.constant 0 : index
    %196 = vector.load %arg18[%c0_96, %c0_97] : memref<1x32xf32, #tpu.memory_space<vmem>>, vector<1x32xf32>
    %197 = vector.broadcast %196 : vector<1x32xf32> to vector<16x32xf32>
    %198 = arith.mulf %195, %197 : vector<16x32xf32>
    %c0_98 = arith.constant 0 : index
    %c0_99 = arith.constant 0 : index
    %199 = vector.load %arg19[%c0_98, %c0_99] : memref<1x32xf32, #tpu.memory_space<vmem>>, vector<1x32xf32>
    %200 = vector.broadcast %199 : vector<1x32xf32> to vector<16x32xf32>
    %201 = arith.addf %198, %200 : vector<16x32xf32>
    %cst_100 = arith.constant 0.000000e+00 : f32
    %202 = vector.broadcast %cst_100 : f32 to vector<16x32xf32>
    %203 = arith.maximumf %201, %202 : vector<16x32xf32>
    %c0_101 = arith.constant 0 : index
    %c0_102 = arith.constant 0 : index
    %204 = vector.load %arg20[%c0_101, %c0_102] : memref<32x32xf32, #tpu.memory_space<vmem>>, vector<32x32xf32>
    %205 = arith.truncf %203 : vector<16x32xf32> to vector<16x32xbf16>
    %206 = arith.truncf %204 : vector<32x32xf32> to vector<32x32xbf16>
    %cst_103 = arith.constant dense<0.000000e+00> : vector<16x32xf32>
    %207 = tpu.matmul %205, %206, %cst_103 {dimension_numbers = #tpu.dot_dimension_numbers<[1], [0], [0], [1], [0, 0, 1, 1], [], []>} : vector<16x32xbf16>, vector<32x32xbf16>, vector<16x32xf32> -> vector<16x32xf32>
    %c0_104 = arith.constant 0 : index
    %c0_105 = arith.constant 0 : index
    %208 = vector.load %arg21[%c0_104, %c0_105] : memref<1x32xf32, #tpu.memory_space<vmem>>, vector<1x32xf32>
    %209 = vector.broadcast %208 : vector<1x32xf32> to vector<16x32xf32>
    %210 = arith.addf %207, %209 : vector<16x32xf32>
    %cst_106 = arith.constant dense<0.000000e+00> : vector<32xf32>
    %211 = vector.multi_reduction <add>, %210, %cst_106 [0] : vector<16x32xf32> to vector<32xf32>
    %212 = vector.shape_cast %211 : vector<32xf32> to vector<1x32xf32>
    %cst_107 = arith.constant 1.600000e+01 : f32
    %213 = vector.broadcast %cst_107 : f32 to vector<1x32xf32>
    %214 = arith.divf %212, %213 : vector<1x32xf32>
    %215 = vector.broadcast %214 : vector<1x32xf32> to vector<16x32xf32>
    %216 = arith.subf %210, %215 : vector<16x32xf32>
    %217 = vector.broadcast %214 : vector<1x32xf32> to vector<16x32xf32>
    %218 = arith.subf %210, %217 : vector<16x32xf32>
    %219 = arith.mulf %216, %218 : vector<16x32xf32>
    %cst_108 = arith.constant dense<0.000000e+00> : vector<32xf32>
    %220 = vector.multi_reduction <add>, %219, %cst_108 [0] : vector<16x32xf32> to vector<32xf32>
    %221 = vector.shape_cast %220 : vector<32xf32> to vector<1x32xf32>
    %cst_109 = arith.constant 1.600000e+01 : f32
    %222 = vector.broadcast %cst_109 : f32 to vector<1x32xf32>
    %223 = arith.divf %221, %222 : vector<1x32xf32>
    %224 = vector.broadcast %214 : vector<1x32xf32> to vector<16x32xf32>
    %225 = arith.subf %210, %224 : vector<16x32xf32>
    %cst_110 = arith.constant 9.99999974E-6 : f32
    %226 = vector.broadcast %cst_110 : f32 to vector<1x32xf32>
    %227 = arith.addf %223, %226 : vector<1x32xf32>
    %228 = math.rsqrt %227 : vector<1x32xf32>
    %229 = vector.broadcast %228 : vector<1x32xf32> to vector<16x32xf32>
    %230 = arith.mulf %225, %229 : vector<16x32xf32>
    %c0_111 = arith.constant 0 : index
    %c0_112 = arith.constant 0 : index
    %231 = vector.load %arg22[%c0_111, %c0_112] : memref<1x32xf32, #tpu.memory_space<vmem>>, vector<1x32xf32>
    %232 = vector.broadcast %231 : vector<1x32xf32> to vector<16x32xf32>
    %233 = arith.mulf %230, %232 : vector<16x32xf32>
    %c0_113 = arith.constant 0 : index
    %c0_114 = arith.constant 0 : index
    %234 = vector.load %arg23[%c0_113, %c0_114] : memref<1x32xf32, #tpu.memory_space<vmem>>, vector<1x32xf32>
    %235 = vector.broadcast %234 : vector<1x32xf32> to vector<16x32xf32>
    %236 = arith.addf %233, %235 : vector<16x32xf32>
    %cst_115 = arith.constant 0.000000e+00 : f32
    %237 = vector.broadcast %cst_115 : f32 to vector<16x32xf32>
    %238 = arith.maximumf %236, %237 : vector<16x32xf32>
    %cst_116 = arith.constant dense<0.000000e+00> : vector<32xf32>
    %239 = vector.multi_reduction <add>, %238, %cst_116 [0] : vector<16x32xf32> to vector<32xf32>
    %240 = vector.shape_cast %239 : vector<32xf32> to vector<1x32xf32>
    %cst_117 = arith.constant 1.600000e+01 : f32
    %241 = vector.broadcast %cst_117 : f32 to vector<1x32xf32>
    %242 = arith.divf %240, %241 : vector<1x32xf32>
    %243 = vector.broadcast %242 : vector<1x32xf32> to vector<16x32xf32>
    %244 = arith.subf %238, %243 : vector<16x32xf32>
    %245 = vector.broadcast %242 : vector<1x32xf32> to vector<16x32xf32>
    %246 = arith.subf %238, %245 : vector<16x32xf32>
    %247 = arith.mulf %244, %246 : vector<16x32xf32>
    %cst_118 = arith.constant dense<0.000000e+00> : vector<32xf32>
    %248 = vector.multi_reduction <add>, %247, %cst_118 [0] : vector<16x32xf32> to vector<32xf32>
    %249 = vector.shape_cast %248 : vector<32xf32> to vector<1x32xf32>
    %cst_119 = arith.constant 1.600000e+01 : f32
    %250 = vector.broadcast %cst_119 : f32 to vector<1x32xf32>
    %251 = arith.divf %249, %250 : vector<1x32xf32>
    %252 = vector.broadcast %242 : vector<1x32xf32> to vector<16x32xf32>
    %253 = arith.subf %238, %252 : vector<16x32xf32>
    %cst_120 = arith.constant 9.99999974E-6 : f32
    %254 = vector.broadcast %cst_120 : f32 to vector<1x32xf32>
    %255 = arith.addf %251, %254 : vector<1x32xf32>
    %256 = math.rsqrt %255 : vector<1x32xf32>
    %257 = vector.broadcast %256 : vector<1x32xf32> to vector<16x32xf32>
    %258 = arith.mulf %253, %257 : vector<16x32xf32>
    %c0_121 = arith.constant 0 : index
    %c0_122 = arith.constant 0 : index
    %259 = vector.load %arg24[%c0_121, %c0_122] : memref<1x32xf32, #tpu.memory_space<vmem>>, vector<1x32xf32>
    %260 = vector.broadcast %259 : vector<1x32xf32> to vector<16x32xf32>
    %261 = arith.mulf %258, %260 : vector<16x32xf32>
    %c0_123 = arith.constant 0 : index
    %c0_124 = arith.constant 0 : index
    %262 = vector.load %arg25[%c0_123, %c0_124] : memref<1x32xf32, #tpu.memory_space<vmem>>, vector<1x32xf32>
    %263 = vector.broadcast %262 : vector<1x32xf32> to vector<16x32xf32>
    %264 = arith.addf %261, %263 : vector<16x32xf32>
    %cst_125 = arith.constant 0.000000e+00 : f32
    %265 = vector.broadcast %cst_125 : f32 to vector<16x32xf32>
    %266 = arith.maximumf %264, %265 : vector<16x32xf32>
    %267 = arith.truncf %266 : vector<16x32xf32> to vector<16x32xbf16>
    %cst_126 = arith.constant dense<0.000000e+00> : vector<32x32xf32>
    %268 = tpu.matmul %3, %267, %cst_126 {dimension_numbers = #tpu.dot_dimension_numbers<[1], [0], [0], [1], [0, 0, 1, 1], [], []>} : vector<32x16xbf16>, vector<16x32xbf16>, vector<32x32xf32> -> vector<32x32xf32>
    %cst_127 = arith.constant dense<0.000000e+00> : vector<32x32xf32>
    %269 = tpu.matmul %5, %267, %cst_127 {dimension_numbers = #tpu.dot_dimension_numbers<[1], [0], [0], [1], [0, 0, 1, 1], [], []>} : vector<32x16xbf16>, vector<16x32xbf16>, vector<32x32xf32> -> vector<32x32xf32>
    %c0_128 = arith.constant 0 : index
    %c0_129 = arith.constant 0 : index
    %270 = vector.load %arg36[%c0_128, %c0_129] : memref<32x32xf32, #tpu.memory_space<vmem>>, vector<32x32xf32>
    %271 = arith.truncf %268 : vector<32x32xf32> to vector<32x32xbf16>
    %272 = arith.truncf %270 : vector<32x32xf32> to vector<32x32xbf16>
    %cst_130 = arith.constant dense<0.000000e+00> : vector<32x32xf32>
    %273 = tpu.matmul %271, %272, %cst_130 {dimension_numbers = #tpu.dot_dimension_numbers<[1], [0], [0], [1], [0, 0, 1, 1], [], []>} : vector<32x32xbf16>, vector<32x32xbf16>, vector<32x32xf32> -> vector<32x32xf32>
    %c0_131 = arith.constant 0 : index
    %c0_132 = arith.constant 0 : index
    %274 = vector.load %arg37[%c0_131, %c0_132] : memref<32x32xf32, #tpu.memory_space<vmem>>, vector<32x32xf32>
    %275 = arith.truncf %269 : vector<32x32xf32> to vector<32x32xbf16>
    %276 = arith.truncf %274 : vector<32x32xf32> to vector<32x32xbf16>
    %cst_133 = arith.constant dense<0.000000e+00> : vector<32x32xf32>
    %277 = tpu.matmul %275, %276, %cst_133 {dimension_numbers = #tpu.dot_dimension_numbers<[1], [0], [0], [1], [0, 0, 1, 1], [], []>} : vector<32x32xbf16>, vector<32x32xbf16>, vector<32x32xf32> -> vector<32x32xf32>
    %278 = arith.addf %273, %277 : vector<32x32xf32>
    %c0_134 = arith.constant 0 : index
    %c0_135 = arith.constant 0 : index
    %279 = vector.load %arg38[%c0_134, %c0_135] : memref<1x32xf32, #tpu.memory_space<vmem>>, vector<1x32xf32>
    %280 = vector.broadcast %279 : vector<1x32xf32> to vector<32x32xf32>
    %281 = arith.addf %278, %280 : vector<32x32xf32>
    %cst_136 = arith.constant 0.000000e+00 : f32
    %282 = vector.broadcast %cst_136 : f32 to vector<32x32xf32>
    %283 = arith.maximumf %281, %282 : vector<32x32xf32>
    %c0_137 = arith.constant 0 : index
    %c0_138 = arith.constant 0 : index
    %284 = vector.load %arg39[%c0_137, %c0_138] : memref<32x128xf32, #tpu.memory_space<vmem>>, vector<32x128xf32>
    %285 = arith.truncf %283 : vector<32x32xf32> to vector<32x32xbf16>
    %286 = arith.truncf %284 : vector<32x128xf32> to vector<32x128xbf16>
    %cst_139 = arith.constant dense<0.000000e+00> : vector<32x128xf32>
    %287 = tpu.matmul %285, %286, %cst_139 {dimension_numbers = #tpu.dot_dimension_numbers<[1], [0], [0], [1], [0, 0, 1, 1], [], []>} : vector<32x32xbf16>, vector<32x128xbf16>, vector<32x128xf32> -> vector<32x128xf32>
    %288 = arith.addf %165, %287 : vector<32x128xf32>
    %c0_140 = arith.constant 0 : index
    %c0_141 = arith.constant 0 : index
    %289 = vector.load %arg40[%c0_140, %c0_141] : memref<1x128xf32, #tpu.memory_space<vmem>>, vector<1x128xf32>
    %290 = vector.broadcast %289 : vector<1x128xf32> to vector<32x128xf32>
    %291 = arith.addf %288, %290 : vector<32x128xf32>
    %c0_142 = arith.constant 0 : index
    %c0_143 = arith.constant 0 : index
    %292 = vector.load %arg41[%c0_142, %c0_143] : memref<32x128xf32, #tpu.memory_space<vmem>>, vector<32x128xf32>
    tpu.vector_store %arg41[%c0_142, %c0_143], %291 {strides = array<i32>} : memref<32x128xf32, #tpu.memory_space<vmem>>, vector<32x128xf32>,
    return
  }
}

</mosaic_0001>

<llo_original>
// kernel: tpu_custom_call.1
$region0: #{tpu_custom_call.1}
  #allocation0 [shape = 'u32[]', space=smem, size = 0x4, offset = 0x4, fixed_abs, tag = 'smem constant byte address 0x4 - core index']
  #allocation1 [shape = 'u32[144,128]{1,0:T(1,128)}', space=vmem, size = 0x12000, scoped, tag = 'internal scratch']
  %s0 = inlined_call_operand.smem [shape: u32[42], index: -1, kind: input, shape index: {}]
  %s1 = sld [smem:[%s0]]
  %s2 = scalar_lea.smem %s0, 1
  %s3 = sld [smem:[%s2]]
  %s4 = scalar_lea.smem %s0, 2
  %s5 = sld [smem:[%s4]]
  %s6 = scalar_lea.smem %s0, 3
  %s7 = sld [smem:[%s6]]
  %s8 = scalar_lea.smem %s0, 4
  %s9 = sld [smem:[%s8]]
  %s10 = scalar_lea.smem %s0, 5
  %s11 = sld [smem:[%s10]]
  %s12 = scalar_lea.smem %s0, 6
  %s13 = sld [smem:[%s12]]
  %s14 = scalar_lea.smem %s0, 7
  %s15 = sld [smem:[%s14]]
  %s16 = scalar_lea.smem %s0, 8
  %s17 = sld [smem:[%s16]]
  %s18 = scalar_lea.smem %s0, 9
  %s19 = sld [smem:[%s18]]
  %s20 = scalar_lea.smem %s0, 10
  %s21 = sld [smem:[%s20]]
  %s22 = scalar_lea.smem %s0, 11
  %s23 = sld [smem:[%s22]]
  %s24 = scalar_lea.smem %s0, 12
  %s25 = sld [smem:[%s24]]
  %s26 = scalar_lea.smem %s0, 13
  %s27 = sld [smem:[%s26]]
  %s28 = scalar_lea.smem %s0, 14
  %s29 = sld [smem:[%s28]]
  %s30 = scalar_lea.smem %s0, 15
  %s31 = sld [smem:[%s30]]
  %s32 = scalar_lea.smem %s0, 16
  %s33 = sld [smem:[%s32]]
  %s34 = scalar_lea.smem %s0, 17
  %s35 = sld [smem:[%s34]]
  %s36 = scalar_lea.smem %s0, 18
  %s37 = sld [smem:[%s36]]
  %s38 = scalar_lea.smem %s0, 19
  %s39 = sld [smem:[%s38]]
  %s40 = scalar_lea.smem %s0, 20
  %s41 = sld [smem:[%s40]]
  %s42 = scalar_lea.smem %s0, 21
  %s43 = sld [smem:[%s42]]
  %s44 = scalar_lea.smem %s0, 22
  %s45 = sld [smem:[%s44]]
  %s46 = scalar_lea.smem %s0, 23
  %s47 = sld [smem:[%s46]]
  %s48 = scalar_lea.smem %s0, 24
  %s49 = sld [smem:[%s48]]
  %s50 = scalar_lea.smem %s0, 25
  %s51 = sld [smem:[%s50]]
  %s52 = scalar_lea.smem %s0, 26
  %s53 = sld [smem:[%s52]]
  %s54 = scalar_lea.smem %s0, 27
  %s55 = sld [smem:[%s54]]
  %s56 = scalar_lea.smem %s0, 28
  %s57 = sld [smem:[%s56]]
  %s58 = scalar_lea.smem %s0, 29
  %s59 = sld [smem:[%s58]]
  %s60 = scalar_lea.smem %s0, 30
  %s61 = sld [smem:[%s60]]
  %s62 = scalar_lea.smem %s0, 31
  %s63 = sld [smem:[%s62]]
  %s64 = scalar_lea.smem %s0, 32
  %s65 = sld [smem:[%s64]]
  %s66 = scalar_lea.smem %s0, 33
  %s67 = sld [smem:[%s66]]
  %s68 = scalar_lea.smem %s0, 34
  %s69 = sld [smem:[%s68]]
  %s70 = scalar_lea.smem %s0, 35
  %s71 = sld [smem:[%s70]]
  %s72 = scalar_lea.smem %s0, 36
  %s73 = sld [smem:[%s72]]
  %s74 = scalar_lea.smem %s0, 37
  %s75 = sld [smem:[%s74]]
  %s76 = scalar_lea.smem %s0, 38
  %s77 = sld [smem:[%s76]]
  %s78 = scalar_lea.smem %s0, 39
  %s79 = sld [smem:[%s78]]
  %s80 = scalar_lea.smem %s0, 40
  %s81 = sld [smem:[%s80]]
  %s82 = scalar_lea.smem %s0, 41
  %s83 = sld [smem:[%s82]]
  %s84 = sld [smem:[#allocation0]]
  $region286: #{tpu_custom_call.1} parent=0
    _
  %s86 = ssub.s32 1, %s84
  %s87 = scalar_select 0, %s86, %s84
  $region1: #{tpu_custom_call.1} parent=0
    #allocation2 [shape = 'u8[8192]{0}', space=vmem, size = 0x2000, scoped, tag = 'input window, operand 1, single buffered']
    #allocation3 [shape = 's32[1]{0}', space=sflag, size = 0x4, scoped, tag = 'scoped memory for tpu_custom_call.1']
    #allocation4 [shape = 's32[1]{0}', space=sflag, size = 0x4, scoped, tag = 'scoped memory for tpu_custom_call.1']
    #allocation5 [shape = 'u8[4096]{0}', space=vmem, size = 0x1000, scoped, tag = 'input window, operand 4, single buffered']
    #allocation6 [shape = 's32[1]{0}', space=sflag, size = 0x4, scoped, tag = 'scoped memory for tpu_custom_call.1']
    #allocation7 [shape = 'u8[512]{0}', space=vmem, size = 0x400, scoped, tag = 'input window, operand 5, single buffered']
    #allocation8 [shape = 'u8[512]{0}', space=vmem, size = 0x400, scoped, tag = 'input window, operand 7, single buffered']
    #allocation9 [shape = 's32[1]{0}', space=sflag, size = 0x4, scoped, tag = 'scoped memory for tpu_custom_call.1']
    #allocation10 [shape = 'u8[512]{0}', space=vmem, size = 0x400, scoped, tag = 'input window, operand 8, single buffered']
    #allocation11 [shape = 'u8[512]{0}', space=vmem, size = 0x400, scoped, tag = 'input window, operand 9, single buffered']
    #allocation12 [shape = 's32[1]{0}', space=sflag, size = 0x4, scoped, tag = 'scoped memory for tpu_custom_call.1']
    #allocation13 [shape = 'u8[512]{0}', space=vmem, size = 0x400, scoped, tag = 'input window, operand 11, single buffered']
    #allocation14 [shape = 'u8[512]{0}', space=vmem, size = 0x400, scoped, tag = 'input window, operand 12, single buffered']
    #allocation15 [shape = 's32[1]{0}', space=sflag, size = 0x4, scoped, tag = 'scoped memory for tpu_custom_call.1']
    #allocation16 [shape = 'u8[512]{0}', space=vmem, size = 0x400, scoped, tag = 'input window, operand 13, single buffered']
    #allocation17 [shape = 'u8[512]{0}', space=vmem, size = 0x400, scoped, tag = 'input window, operand 14, single buffered']
    #allocation18 [shape = 's32[1]{0}', space=sflag, size = 0x4, scoped, tag = 'scoped memory for tpu_custom_call.1']
    #allocation19 [shape = 'u8[512]{0}', space=vmem, size = 0x400, scoped, tag = 'input window, operand 15, single buffered']
    #allocation20 [shape = 'u8[512]{0}', space=vmem, size = 0x400, scoped, tag = 'input window, operand 17, single buffered']
    #allocation21 [shape = 's32[1]{0}', space=sflag, size = 0x4, scoped, tag = 'scoped memory for tpu_custom_call.1']
    #allocation22 [shape = 'u8[512]{0}', space=vmem, size = 0x400, scoped, tag = 'input window, operand 18, single buffered']
    #allocation23 [shape = 'u8[512]{0}', space=vmem, size = 0x400, scoped, tag = 'input window, operand 19, single buffered']
    #allocation24 [shape = 's32[1]{0}', space=sflag, size = 0x4, scoped, tag = 'scoped memory for tpu_custom_call.1']
    #allocation25 [shape = 'u8[512]{0}', space=vmem, size = 0x400, scoped, tag = 'input window, operand 21, single buffered']
    #allocation26 [shape = 'u8[512]{0}', space=vmem, size = 0x400, scoped, tag = 'input window, operand 22, single buffered']
    #allocation27 [shape = 's32[1]{0}', space=sflag, size = 0x4, scoped, tag = 'scoped memory for tpu_custom_call.1']
    #allocation28 [shape = 'u8[512]{0}', space=vmem, size = 0x400, scoped, tag = 'input window, operand 23, single buffered']
    #allocation29 [shape = 'u8[512]{0}', space=vmem, size = 0x400, scoped, tag = 'input window, operand 24, single buffered']
    #allocation30 [shape = 's32[1]{0}', space=sflag, size = 0x4, scoped, tag = 'scoped memory for tpu_custom_call.1']
    #allocation31 [shape = 'u8[512]{0}', space=vmem, size = 0x400, scoped, tag = 'input window, operand 25, single buffered']
    #allocation32 [shape = 'u8[512]{0}', space=vmem, size = 0x400, scoped, tag = 'input window, operand 28, single buffered']
    #allocation33 [shape = 's32[1]{0}', space=sflag, size = 0x4, scoped, tag = 'scoped memory for tpu_custom_call.1']
    #allocation34 [shape = 'u8[512]{0}', space=vmem, size = 0x400, scoped, tag = 'input window, operand 30, single buffered']
    #allocation35 [shape = 'u8[16384]{0}', space=vmem, size = 0x4000, scoped, tag = 'input window, operand 31, single buffered']
    #allocation36 [shape = 's32[1]{0}', space=sflag, size = 0x4, scoped, tag = 'scoped memory for tpu_custom_call.1']
    #allocation37 [shape = 'u8[16384]{0}', space=vmem, size = 0x4000, scoped, tag = 'input window, operand 32, single buffered']
    #allocation38 [shape = 'u8[512]{0}', space=vmem, size = 0x400, scoped, tag = 'input window, operand 33, single buffered']
    #allocation39 [shape = 's32[1]{0}', space=sflag, size = 0x4, scoped, tag = 'scoped memory for tpu_custom_call.1']
    #allocation40 [shape = 'u8[16384]{0}', space=vmem, size = 0x4000, scoped, tag = 'input window, operand 34, single buffered']
    #allocation41 [shape = 'u8[512]{0}', space=vmem, size = 0x400, scoped, tag = 'input window, operand 35, single buffered']
    #allocation42 [shape = 's32[1]{0}', space=sflag, size = 0x4, scoped, tag = 'scoped memory for tpu_custom_call.1']
    #allocation43 [shape = 'u8[16384]{0}', space=vmem, size = 0x4000, scoped, tag = 'input window, operand 37, single buffered']
    #allocation44 [shape = 'u8[16384]{0}', space=vmem, size = 0x4000, scoped, tag = 'input window, operand 39, single buffered']
    #allocation45 [shape = 's32[1]{0}', space=sflag, size = 0x4, scoped, tag = 'scoped memory for tpu_custom_call.1']
    #allocation46 [shape = 'u8[16384]{0}', space=vmem, size = 0x4000, scoped, tag = 'output window, operand 0, single buffered']
    %88 = vsyncpa [#allocation3], 0
    %89 = vsyncpa [#allocation6], 0
    %90 = vsyncpa [#allocation9], 0
    %91 = vsyncpa [#allocation12], 0
    %92 = vsyncpa [#allocation15], 0
    %93 = vsyncpa [#allocation18], 0
    %94 = vsyncpa [#allocation21], 0
    %95 = vsyncpa [#allocation24], 0
    %96 = vsyncpa [#allocation27], 0
    %97 = vsyncpa [#allocation30], 0
    %98 = vsyncpa [#allocation33], 0
    %99 = vsyncpa [#allocation36], 0
    %100 = vsyncpa [#allocation39], 0
    %101 = vsyncpa [#allocation42], 0
    %102 = vsyncpa [#allocation45], 0
    %103 = vsyncpa [#allocation4], 0
    // Predicated region
    $region2: #{tpu_custom_call.1} parent=1 // pred_check
      _
    $region3: #{tpu_custom_call.1} parent=1 // pred_check_branch
      %105 = sbr.rel (0) target = $region5
    $region4: #{tpu_custom_call.1} parent=1 // pred_region
      _
    $region5: #{tpu_custom_call.1} parent=1 // pred_fallthru
      _
    // Predicated region
    $region6: #{tpu_custom_call.1} parent=1 // pred_check
      _
    $region7: #{tpu_custom_call.1} parent=1 // pred_check_branch
      %107 = sbr.rel (0) target = $region9
    $region8: #{tpu_custom_call.1} parent=1 // pred_region
      %s109 = ssub.s32 256, 256
      %110 = vsyncadd [#allocation3], %s109
      %s111 = sshll.u32 [#allocation2], 4
      %s112 = int_to_ptr.vmem [resolvable:$true] %s111
      %117 = dma.hbm_to_vmem [thread:$0]  %s3, 256, %s112, [#allocation3], 128, 128, 8
    $region9: #{tpu_custom_call.1} parent=1 // pred_fallthru
      _
    // Predicated region
    $region10: #{tpu_custom_call.1} parent=1 // pred_check
      _
    $region11: #{tpu_custom_call.1} parent=1 // pred_check_branch
      %119 = sbr.rel (0) target = $region13
    $region12: #{tpu_custom_call.1} parent=1 // pred_region
      _
    $region13: #{tpu_custom_call.1} parent=1 // pred_fallthru
      _
    // Predicated region
    $region14: #{tpu_custom_call.1} parent=1 // pred_check
      _
    $region15: #{tpu_custom_call.1} parent=1 // pred_check_branch
      %121 = sbr.rel (0) target = $region17
    $region16: #{tpu_custom_call.1} parent=1 // pred_region
      _
    $region17: #{tpu_custom_call.1} parent=1 // pred_fallthru
      _
    // Predicated region
    $region18: #{tpu_custom_call.1} parent=1 // pred_check
      _
    $region19: #{tpu_custom_call.1} parent=1 // pred_check_branch
      %123 = sbr.rel (0) target = $region21
    $region20: #{tpu_custom_call.1} parent=1 // pred_region
      %s125 = ssub.s32 128, 128
      %126 = vsyncadd [#allocation6], %s125
      %s128 = sshll.u32 [#allocation5], 4
      %s129 = int_to_ptr.vmem [resolvable:$true] %s128
      %131 = dma.hbm_to_vmem [thread:$0]  %s9, 128, %s129, [#allocation6]
    $region21: #{tpu_custom_call.1} parent=1 // pred_fallthru
      _
    // Predicated region
    $region22: #{tpu_custom_call.1} parent=1 // pred_check
      _
    $region23: #{tpu_custom_call.1} parent=1 // pred_check_branch
      %133 = sbr.rel (0) target = $region25
    $region24: #{tpu_custom_call.1} parent=1 // pred_region
      %s135 = ssub.s32 16, 16
      %136 = vsyncadd [#allocation6], %s135
      %s138 = sshll.u32 [#allocation7], 4
      %s139 = int_to_ptr.vmem [resolvable:$true] %s138
      %141 = dma.hbm_to_vmem [thread:$0]  %s11, 16, %s139, [#allocation6]
    $region25: #{tpu_custom_call.1} parent=1 // pred_fallthru
      _
    // Predicated region
    $region26: #{tpu_custom_call.1} parent=1 // pred_check
      _
    $region27: #{tpu_custom_call.1} parent=1 // pred_check_branch
      %143 = sbr.rel (0) target = $region29
    $region28: #{tpu_custom_call.1} parent=1 // pred_region
      _
    $region29: #{tpu_custom_call.1} parent=1 // pred_fallthru
      _
    // Predicated region
    $region30: #{tpu_custom_call.1} parent=1 // pred_check
      _
    $region31: #{tpu_custom_call.1} parent=1 // pred_check_branch
      %145 = sbr.rel (0) target = $region33
    $region32: #{tpu_custom_call.1} parent=1 // pred_region
      %s147 = ssub.s32 16, 16
      %148 = vsyncadd [#allocation9], %s147
      %s150 = sshll.u32 [#allocation8], 4
      %s151 = int_to_ptr.vmem [resolvable:$true] %s150
      %153 = dma.hbm_to_vmem [thread:$0]  %s15, 16, %s151, [#allocation9]
    $region33: #{tpu_custom_call.1} parent=1 // pred_fallthru
      _
    // Predicated region
    $region34: #{tpu_custom_call.1} parent=1 // pred_check
      _
    $region35: #{tpu_custom_call.1} parent=1 // pred_check_branch
      %155 = sbr.rel (0) target = $region37
    $region36: #{tpu_custom_call.1} parent=1 // pred_region
      %s157 = ssub.s32 16, 16
      %158 = vsyncadd [#allocation9], %s157
      %s160 = sshll.u32 [#allocation10], 4
      %s161 = int_to_ptr.vmem [resolvable:$true] %s160
      %163 = dma.hbm_to_vmem [thread:$0]  %s17, 16, %s161, [#allocation9]
    $region37: #{tpu_custom_call.1} parent=1 // pred_fallthru
      _
    // Predicated region
    $region38: #{tpu_custom_call.1} parent=1 // pred_check
      _
    $region39: #{tpu_custom_call.1} parent=1 // pred_check_branch
      %165 = sbr.rel (0) target = $region41
    $region40: #{tpu_custom_call.1} parent=1 // pred_region
      %s167 = ssub.s32 16, 16
      %168 = vsyncadd [#allocation12], %s167
      %s170 = sshll.u32 [#allocation11], 4
      %s171 = int_to_ptr.vmem [resolvable:$true] %s170
      %173 = dma.hbm_to_vmem [thread:$0]  %s19, 16, %s171, [#allocation12]
    $region41: #{tpu_custom_call.1} parent=1 // pred_fallthru
      _
    // Predicated region
    $region42: #{tpu_custom_call.1} parent=1 // pred_check
      _
    $region43: #{tpu_custom_call.1} parent=1 // pred_check_branch
      %175 = sbr.rel (0) target = $region45
    $region44: #{tpu_custom_call.1} parent=1 // pred_region
      _
    $region45: #{tpu_custom_call.1} parent=1 // pred_fallthru
      _
    // Predicated region
    $region46: #{tpu_custom_call.1} parent=1 // pred_check
      _
    $region47: #{tpu_custom_call.1} parent=1 // pred_check_branch
      %177 = sbr.rel (0) target = $region49
    $region48: #{tpu_custom_call.1} parent=1 // pred_region
      %s179 = ssub.s32 16, 16
      %180 = vsyncadd [#allocation12], %s179
      %s182 = sshll.u32 [#allocation13], 4
      %s183 = int_to_ptr.vmem [resolvable:$true] %s182
      %185 = dma.hbm_to_vmem [thread:$0]  %s23, 16, %s183, [#allocation12]
    $region49: #{tpu_custom_call.1} parent=1 // pred_fallthru
      _
    // Predicated region
    $region50: #{tpu_custom_call.1} parent=1 // pred_check
      _
    $region51: #{tpu_custom_call.1} parent=1 // pred_check_branch
      %187 = sbr.rel (0) target = $region53
    $region52: #{tpu_custom_call.1} parent=1 // pred_region
      %s189 = ssub.s32 16, 16
      %190 = vsyncadd [#allocation15], %s189
      %s192 = sshll.u32 [#allocation14], 4
      %s193 = int_to_ptr.vmem [resolvable:$true] %s192
      %195 = dma.hbm_to_vmem [thread:$0]  %s25, 16, %s193, [#allocation15]
    $region53: #{tpu_custom_call.1} parent=1 // pred_fallthru
      _
    // Predicated region
    $region54: #{tpu_custom_call.1} parent=1 // pred_check
      _
    $region55: #{tpu_custom_call.1} parent=1 // pred_check_branch
      %197 = sbr.rel (0) target = $region57
    $region56: #{tpu_custom_call.1} parent=1 // pred_region
      %s199 = ssub.s32 16, 16
      %200 = vsyncadd [#allocation15], %s199
      %s202 = sshll.u32 [#allocation16], 4
      %s203 = int_to_ptr.vmem [resolvable:$true] %s202
      %205 = dma.hbm_to_vmem [thread:$0]  %s27, 16, %s203, [#allocation15]
    $region57: #{tpu_custom_call.1} parent=1 // pred_fallthru
      _
    // Predicated region
    $region58: #{tpu_custom_call.1} parent=1 // pred_check
      _
    $region59: #{tpu_custom_call.1} parent=1 // pred_check_branch
      %207 = sbr.rel (0) target = $region61
    $region60: #{tpu_custom_call.1} parent=1 // pred_region
      %s209 = ssub.s32 16, 16
      %210 = vsyncadd [#allocation18], %s209
      %s212 = sshll.u32 [#allocation17], 4
      %s213 = int_to_ptr.vmem [resolvable:$true] %s212
      %215 = dma.hbm_to_vmem [thread:$0]  %s29, 16, %s213, [#allocation18]
    $region61: #{tpu_custom_call.1} parent=1 // pred_fallthru
      _
    // Predicated region
    $region62: #{tpu_custom_call.1} parent=1 // pred_check
      _
    $region63: #{tpu_custom_call.1} parent=1 // pred_check_branch
      %217 = sbr.rel (0) target = $region65
    $region64: #{tpu_custom_call.1} parent=1 // pred_region
      %s219 = ssub.s32 16, 16
      %220 = vsyncadd [#allocation18], %s219
      %s222 = sshll.u32 [#allocation19], 4
      %s223 = int_to_ptr.vmem [resolvable:$true] %s222
      %225 = dma.hbm_to_vmem [thread:$0]  %s31, 16, %s223, [#allocation18]
    $region65: #{tpu_custom_call.1} parent=1 // pred_fallthru
      _
    // Predicated region
    $region66: #{tpu_custom_call.1} parent=1 // pred_check
      _
    $region67: #{tpu_custom_call.1} parent=1 // pred_check_branch
      %227 = sbr.rel (0) target = $region69
    $region68: #{tpu_custom_call.1} parent=1 // pred_region
      _
    $region69: #{tpu_custom_call.1} parent=1 // pred_fallthru
      _
    // Predicated region
    $region70: #{tpu_custom_call.1} parent=1 // pred_check
      _
    $region71: #{tpu_custom_call.1} parent=1 // pred_check_branch
      %229 = sbr.rel (0) target = $region73
    $region72: #{tpu_custom_call.1} parent=1 // pred_region
      %s231 = ssub.s32 16, 16
      %232 = vsyncadd [#allocation21], %s231
      %s234 = sshll.u32 [#allocation20], 4
      %s235 = int_to_ptr.vmem [resolvable:$true] %s234
      %237 = dma.hbm_to_vmem [thread:$0]  %s35, 16, %s235, [#allocation21]
    $region73: #{tpu_custom_call.1} parent=1 // pred_fallthru
      _
    // Predicated region
    $region74: #{tpu_custom_call.1} parent=1 // pred_check
      _
    $region75: #{tpu_custom_call.1} parent=1 // pred_check_branch
      %239 = sbr.rel (0) target = $region77
    $region76: #{tpu_custom_call.1} parent=1 // pred_region
      %s241 = ssub.s32 16, 16
      %242 = vsyncadd [#allocation21], %s241
      %s244 = sshll.u32 [#allocation22], 4
      %s245 = int_to_ptr.vmem [resolvable:$true] %s244
      %247 = dma.hbm_to_vmem [thread:$0]  %s37, 16, %s245, [#allocation21]
    $region77: #{tpu_custom_call.1} parent=1 // pred_fallthru
      _
    // Predicated region
    $region78: #{tpu_custom_call.1} parent=1 // pred_check
      _
    $region79: #{tpu_custom_call.1} parent=1 // pred_check_branch
      %249 = sbr.rel (0) target = $region81
    $region80: #{tpu_custom_call.1} parent=1 // pred_region
      %s251 = ssub.s32 16, 16
      %252 = vsyncadd [#allocation24], %s251
      %s254 = sshll.u32 [#allocation23], 4
      %s255 = int_to_ptr.vmem [resolvable:$true] %s254
      %257 = dma.hbm_to_vmem [thread:$0]  %s39, 16, %s255, [#allocation24]
    $region81: #{tpu_custom_call.1} parent=1 // pred_fallthru
      _
    // Predicated region
    $region82: #{tpu_custom_call.1} parent=1 // pred_check
      _
    $region83: #{tpu_custom_call.1} parent=1 // pred_check_branch
      %259 = sbr.rel (0) target = $region85
    $region84: #{tpu_custom_call.1} parent=1 // pred_region
      _
    $region85: #{tpu_custom_call.1} parent=1 // pred_fallthru
      _
    // Predicated region
    $region86: #{tpu_custom_call.1} parent=1 // pred_check
      _
    $region87: #{tpu_custom_call.1} parent=1 // pred_check_branch
      %261 = sbr.rel (0) target = $region89
    $region88: #{tpu_custom_call.1} parent=1 // pred_region
      %s263 = ssub.s32 16, 16
      %264 = vsyncadd [#allocation24], %s263
      %s266 = sshll.u32 [#allocation25], 4
      %s267 = int_to_ptr.vmem [resolvable:$true] %s266
      %269 = dma.hbm_to_vmem [thread:$0]  %s43, 16, %s267, [#allocation24]
    $region89: #{tpu_custom_call.1} parent=1 // pred_fallthru
      _
    // Predicated region
    $region90: #{tpu_custom_call.1} parent=1 // pred_check
      _
    $region91: #{tpu_custom_call.1} parent=1 // pred_check_branch
      %271 = sbr.rel (0) target = $region93
    $region92: #{tpu_custom_call.1} parent=1 // pred_region
      %s273 = ssub.s32 16, 16
      %274 = vsyncadd [#allocation27], %s273
      %s276 = sshll.u32 [#allocation26], 4
      %s277 = int_to_ptr.vmem [resolvable:$true] %s276
      %279 = dma.hbm_to_vmem [thread:$0]  %s45, 16, %s277, [#allocation27]
    $region93: #{tpu_custom_call.1} parent=1 // pred_fallthru
      _
    // Predicated region
    $region94: #{tpu_custom_call.1} parent=1 // pred_check
      _
    $region95: #{tpu_custom_call.1} parent=1 // pred_check_branch
      %281 = sbr.rel (0) target = $region97
    $region96: #{tpu_custom_call.1} parent=1 // pred_region
      %s283 = ssub.s32 16, 16
      %284 = vsyncadd [#allocation27], %s283
      %s286 = sshll.u32 [#allocation28], 4
      %s287 = int_to_ptr.vmem [resolvable:$true] %s286
      %289 = dma.hbm_to_vmem [thread:$0]  %s47, 16, %s287, [#allocation27]
    $region97: #{tpu_custom_call.1} parent=1 // pred_fallthru
      _
    // Predicated region
    $region98: #{tpu_custom_call.1} parent=1 // pred_check
      _
    $region99: #{tpu_custom_call.1} parent=1 // pred_check_branch
      %291 = sbr.rel (0) target = $region101
    $region100: #{tpu_custom_call.1} parent=1 // pred_region
      %s293 = ssub.s32 16, 16
      %294 = vsyncadd [#allocation30], %s293
      %s296 = sshll.u32 [#allocation29], 4
      %s297 = int_to_ptr.vmem [resolvable:$true] %s296
      %299 = dma.hbm_to_vmem [thread:$0]  %s49, 16, %s297, [#allocation30]
    $region101: #{tpu_custom_call.1} parent=1 // pred_fallthru
      _
    // Predicated region
    $region102: #{tpu_custom_call.1} parent=1 // pred_check
      _
    $region103: #{tpu_custom_call.1} parent=1 // pred_check_branch
      %301 = sbr.rel (0) target = $region105
    $region104: #{tpu_custom_call.1} parent=1 // pred_region
      %s303 = ssub.s32 16, 16
      %304 = vsyncadd [#allocation30], %s303
      %s306 = sshll.u32 [#allocation31], 4
      %s307 = int_to_ptr.vmem [resolvable:$true] %s306
      %309 = dma.hbm_to_vmem [thread:$0]  %s51, 16, %s307, [#allocation30]
    $region105: #{tpu_custom_call.1} parent=1 // pred_fallthru
      _
    // Predicated region
    $region106: #{tpu_custom_call.1} parent=1 // pred_check
      _
    $region107: #{tpu_custom_call.1} parent=1 // pred_check_branch
      %311 = sbr.rel (0) target = $region109
    $region108: #{tpu_custom_call.1} parent=1 // pred_region
      _
    $region109: #{tpu_custom_call.1} parent=1 // pred_fallthru
      _
    // Predicated region
    $region110: #{tpu_custom_call.1} parent=1 // pred_check
      _
    $region111: #{tpu_custom_call.1} parent=1 // pred_check_branch
      %313 = sbr.rel (0) target = $region113
    $region112: #{tpu_custom_call.1} parent=1 // pred_region
      _
    $region113: #{tpu_custom_call.1} parent=1 // pred_fallthru
      _
    // Predicated region
    $region114: #{tpu_custom_call.1} parent=1 // pred_check
      _
    $region115: #{tpu_custom_call.1} parent=1 // pred_check_branch
      %315 = sbr.rel (0) target = $region117
    $region116: #{tpu_custom_call.1} parent=1 // pred_region
      %s317 = ssub.s32 16, 16
      %318 = vsyncadd [#allocation33], %s317
      %s320 = sshll.u32 [#allocation32], 4
      %s321 = int_to_ptr.vmem [resolvable:$true] %s320
      %323 = dma.hbm_to_vmem [thread:$0]  %s57, 16, %s321, [#allocation33]
    $region117: #{tpu_custom_call.1} parent=1 // pred_fallthru
      _
    // Predicated region
    $region118: #{tpu_custom_call.1} parent=1 // pred_check
      _
    $region119: #{tpu_custom_call.1} parent=1 // pred_check_branch
      %325 = sbr.rel (0) target = $region121
    $region120: #{tpu_custom_call.1} parent=1 // pred_region
      _
    $region121: #{tpu_custom_call.1} parent=1 // pred_fallthru
      _
    // Predicated region
    $region122: #{tpu_custom_call.1} parent=1 // pred_check
      _
    $region123: #{tpu_custom_call.1} parent=1 // pred_check_branch
      %327 = sbr.rel (0) target = $region125
    $region124: #{tpu_custom_call.1} parent=1 // pred_region
      %s329 = ssub.s32 16, 16
      %330 = vsyncadd [#allocation33], %s329
      %s332 = sshll.u32 [#allocation34], 4
      %s333 = int_to_ptr.vmem [resolvable:$true] %s332
      %335 = dma.hbm_to_vmem [thread:$0]  %s61, 16, %s333, [#allocation33]
    $region125: #{tpu_custom_call.1} parent=1 // pred_fallthru
      _
    // Predicated region
    $region126: #{tpu_custom_call.1} parent=1 // pred_check
      _
    $region127: #{tpu_custom_call.1} parent=1 // pred_check_branch
      %337 = sbr.rel (0) target = $region129
    $region128: #{tpu_custom_call.1} parent=1 // pred_region
      %s339 = ssub.s32 512, 512
      %340 = vsyncadd [#allocation36], %s339
      %s341 = sshll.u32 [#allocation35], 4
      %s342 = int_to_ptr.vmem [resolvable:$true] %s341
      %347 = dma.hbm_to_vmem [thread:$0]  %s63, 512, %s342, [#allocation36], 128, 128, 8
    $region129: #{tpu_custom_call.1} parent=1 // pred_fallthru
      _
    // Predicated region
    $region130: #{tpu_custom_call.1} parent=1 // pred_check
      _
    $region131: #{tpu_custom_call.1} parent=1 // pred_check_branch
      %349 = sbr.rel (0) target = $region133
    $region132: #{tpu_custom_call.1} parent=1 // pred_region
      %s351 = ssub.s32 512, 512
      %352 = vsyncadd [#allocation36], %s351
      %s353 = sshll.u32 [#allocation37], 4
      %s354 = int_to_ptr.vmem [resolvable:$true] %s353
      %359 = dma.hbm_to_vmem [thread:$0]  %s65, 512, %s354, [#allocation36], 128, 128, 8
    $region133: #{tpu_custom_call.1} parent=1 // pred_fallthru
      _
    // Predicated region
    $region134: #{tpu_custom_call.1} parent=1 // pred_check
      _
    $region135: #{tpu_custom_call.1} parent=1 // pred_check_branch
      %361 = sbr.rel (0) target = $region137
    $region136: #{tpu_custom_call.1} parent=1 // pred_region
      %s363 = ssub.s32 16, 16
      %364 = vsyncadd [#allocation39], %s363
      %s366 = sshll.u32 [#allocation38], 4
      %s367 = int_to_ptr.vmem [resolvable:$true] %s366
      %369 = dma.hbm_to_vmem [thread:$0]  %s67, 16, %s367, [#allocation39]
    $region137: #{tpu_custom_call.1} parent=1 // pred_fallthru
      _
    // Predicated region
    $region138: #{tpu_custom_call.1} parent=1 // pred_check
      _
    $region139: #{tpu_custom_call.1} parent=1 // pred_check_branch
      %371 = sbr.rel (0) target = $region141
    $region140: #{tpu_custom_call.1} parent=1 // pred_region
      %s373 = ssub.s32 512, 512
      %374 = vsyncadd [#allocation39], %s373
      %s375 = sshll.u32 [#allocation40], 4
      %s376 = int_to_ptr.vmem [resolvable:$true] %s375
      %381 = dma.hbm_to_vmem [thread:$0]  %s69, 512, %s376, [#allocation39], 128, 128, 8
    $region141: #{tpu_custom_call.1} parent=1 // pred_fallthru
      _
    // Predicated region
    $region142: #{tpu_custom_call.1} parent=1 // pred_check
      _
    $region143: #{tpu_custom_call.1} parent=1 // pred_check_branch
      %383 = sbr.rel (0) target = $region145
    $region144: #{tpu_custom_call.1} parent=1 // pred_region
      %s385 = ssub.s32 16, 16
      %386 = vsyncadd [#allocation42], %s385
      %s388 = sshll.u32 [#allocation41], 4
      %s389 = int_to_ptr.vmem [resolvable:$true] %s388
      %391 = dma.hbm_to_vmem [thread:$0]  %s71, 16, %s389, [#allocation42]
    $region145: #{tpu_custom_call.1} parent=1 // pred_fallthru
      _
    // Predicated region
    $region146: #{tpu_custom_call.1} parent=1 // pred_check
      _
    $region147: #{tpu_custom_call.1} parent=1 // pred_check_branch
      %393 = sbr.rel (0) target = $region149
    $region148: #{tpu_custom_call.1} parent=1 // pred_region
      _
    $region149: #{tpu_custom_call.1} parent=1 // pred_fallthru
      _
    // Predicated region
    $region150: #{tpu_custom_call.1} parent=1 // pred_check
      _
    $region151: #{tpu_custom_call.1} parent=1 // pred_check_branch
      %395 = sbr.rel (0) target = $region153
    $region152: #{tpu_custom_call.1} parent=1 // pred_region
      %s397 = ssub.s32 512, 512
      %398 = vsyncadd [#allocation42], %s397
      %s399 = sshll.u32 [#allocation43], 4
      %s400 = int_to_ptr.vmem [resolvable:$true] %s399
      %405 = dma.hbm_to_vmem [thread:$0]  %s75, 512, %s400, [#allocation42], 128, 128, 8
    $region153: #{tpu_custom_call.1} parent=1 // pred_fallthru
      _
    // Predicated region
    $region154: #{tpu_custom_call.1} parent=1 // pred_check
      _
    $region155: #{tpu_custom_call.1} parent=1 // pred_check_branch
      %407 = sbr.rel (0) target = $region157
    $region156: #{tpu_custom_call.1} parent=1 // pred_region
      _
    $region157: #{tpu_custom_call.1} parent=1 // pred_fallthru
      _
    // Predicated region
    $region158: #{tpu_custom_call.1} parent=1 // pred_check
      _
    $region159: #{tpu_custom_call.1} parent=1 // pred_check_branch
      %409 = sbr.rel (0) target = $region161
    $region160: #{tpu_custom_call.1} parent=1 // pred_region
      %s411 = ssub.s32 512, 512
      %412 = vsyncadd [#allocation45], %s411
      %s413 = sshll.u32 [#allocation44], 4
      %s414 = int_to_ptr.vmem [resolvable:$true] %s413
      %419 = dma.hbm_to_vmem [thread:$0]  %s79, 512, %s414, [#allocation45], 128, 128, 8
    $region161: #{tpu_custom_call.1} parent=1 // pred_fallthru
      _
    // Predicated region
    $region162: #{tpu_custom_call.1} parent=1 // pred_check
      _
    $region163: #{tpu_custom_call.1} parent=1 // pred_check_branch
      %421 = sbr.rel (0) target = $region165
    $region164: #{tpu_custom_call.1} parent=1 // pred_region
      _
    $region165: #{tpu_custom_call.1} parent=1 // pred_fallthru
      _
    // Predicated region
    $region166: #{tpu_custom_call.1} parent=1 // pred_check
      _
    $region167: #{tpu_custom_call.1} parent=1 // pred_check_branch
      %423 = sbr.rel (0) target = $region169
    $region168: #{tpu_custom_call.1} parent=1 // pred_region
      %424 = dma.done [#allocation3], 256
    $region169: #{tpu_custom_call.1} parent=1 // pred_fallthru
      _
    // Predicated region
    $region170: #{tpu_custom_call.1} parent=1 // pred_check
      _
    $region171: #{tpu_custom_call.1} parent=1 // pred_check_branch
      %426 = sbr.rel (0) target = $region173
    $region172: #{tpu_custom_call.1} parent=1 // pred_region
      %427 = dma.done [#allocation6], 128
    $region173: #{tpu_custom_call.1} parent=1 // pred_fallthru
      _
    // Predicated region
    $region174: #{tpu_custom_call.1} parent=1 // pred_check
      _
    $region175: #{tpu_custom_call.1} parent=1 // pred_check_branch
      %429 = sbr.rel (0) target = $region177
    $region176: #{tpu_custom_call.1} parent=1 // pred_region
      %430 = dma.done [#allocation6], 16
    $region177: #{tpu_custom_call.1} parent=1 // pred_fallthru
      _
    // Predicated region
    $region178: #{tpu_custom_call.1} parent=1 // pred_check
      _
    $region179: #{tpu_custom_call.1} parent=1 // pred_check_branch
      %432 = sbr.rel (0) target = $region181
    $region180: #{tpu_custom_call.1} parent=1 // pred_region
      %433 = dma.done [#allocation9], 16
    $region181: #{tpu_custom_call.1} parent=1 // pred_fallthru
      _
    // Predicated region
    $region182: #{tpu_custom_call.1} parent=1 // pred_check
      _
    $region183: #{tpu_custom_call.1} parent=1 // pred_check_branch
      %435 = sbr.rel (0) target = $region185
    $region184: #{tpu_custom_call.1} parent=1 // pred_region
      %436 = dma.done [#allocation9], 16
    $region185: #{tpu_custom_call.1} parent=1 // pred_fallthru
      _
    // Predicated region
    $region186: #{tpu_custom_call.1} parent=1 // pred_check
      _
    $region187: #{tpu_custom_call.1} parent=1 // pred_check_branch
      %438 = sbr.rel (0) target = $region189
    $region188: #{tpu_custom_call.1} parent=1 // pred_region
      %439 = dma.done [#allocation12], 16
    $region189: #{tpu_custom_call.1} parent=1 // pred_fallthru
      _
    // Predicated region
    $region190: #{tpu_custom_call.1} parent=1 // pred_check
      _
    $region191: #{tpu_custom_call.1} parent=1 // pred_check_branch
      %441 = sbr.rel (0) target = $region193
    $region192: #{tpu_custom_call.1} parent=1 // pred_region
      %442 = dma.done [#allocation12], 16
    $region193: #{tpu_custom_call.1} parent=1 // pred_fallthru
      _
    // Predicated region
    $region194: #{tpu_custom_call.1} parent=1 // pred_check
      _
    $region195: #{tpu_custom_call.1} parent=1 // pred_check_branch
      %444 = sbr.rel (0) target = $region197
    $region196: #{tpu_custom_call.1} parent=1 // pred_region
      %445 = dma.done [#allocation15], 16
    $region197: #{tpu_custom_call.1} parent=1 // pred_fallthru
      _
    // Predicated region
    $region198: #{tpu_custom_call.1} parent=1 // pred_check
      _
    $region199: #{tpu_custom_call.1} parent=1 // pred_check_branch
      %447 = sbr.rel (0) target = $region201
    $region200: #{tpu_custom_call.1} parent=1 // pred_region
      %448 = dma.done [#allocation15], 16
    $region201: #{tpu_custom_call.1} parent=1 // pred_fallthru
      _
    // Predicated region
    $region202: #{tpu_custom_call.1} parent=1 // pred_check
      _
    $region203: #{tpu_custom_call.1} parent=1 // pred_check_branch
      %450 = sbr.rel (0) target = $region205
    $region204: #{tpu_custom_call.1} parent=1 // pred_region
      %451 = dma.done [#allocation18], 16
    $region205: #{tpu_custom_call.1} parent=1 // pred_fallthru
      _
    // Predicated region
    $region206: #{tpu_custom_call.1} parent=1 // pred_check
      _
    $region207: #{tpu_custom_call.1} parent=1 // pred_check_branch
      %453 = sbr.rel (0) target = $region209
    $region208: #{tpu_custom_call.1} parent=1 // pred_region
      %454 = dma.done [#allocation18], 16
    $region209: #{tpu_custom_call.1} parent=1 // pred_fallthru
      _
    // Predicated region
    $region210: #{tpu_custom_call.1} parent=1 // pred_check
      _
    $region211: #{tpu_custom_call.1} parent=1 // pred_check_branch
      %456 = sbr.rel (0) target = $region213
    $region212: #{tpu_custom_call.1} parent=1 // pred_region
      %457 = dma.done [#allocation21], 16
    $region213: #{tpu_custom_call.1} parent=1 // pred_fallthru
      _
    // Predicated region
    $region214: #{tpu_custom_call.1} parent=1 // pred_check
      _
    $region215: #{tpu_custom_call.1} parent=1 // pred_check_branch
      %459 = sbr.rel (0) target = $region217
    $region216: #{tpu_custom_call.1} parent=1 // pred_region
      %460 = dma.done [#allocation21], 16
    $region217: #{tpu_custom_call.1} parent=1 // pred_fallthru
      _
    // Predicated region
    $region218: #{tpu_custom_call.1} parent=1 // pred_check
      _
    $region219: #{tpu_custom_call.1} parent=1 // pred_check_branch
      %462 = sbr.rel (0) target = $region221
    $region220: #{tpu_custom_call.1} parent=1 // pred_region
      %463 = dma.done [#allocation24], 16
    $region221: #{tpu_custom_call.1} parent=1 // pred_fallthru
      _
    // Predicated region
    $region222: #{tpu_custom_call.1} parent=1 // pred_check
      _
    $region223: #{tpu_custom_call.1} parent=1 // pred_check_branch
      %465 = sbr.rel (0) target = $region225
    $region224: #{tpu_custom_call.1} parent=1 // pred_region
      %466 = dma.done [#allocation24], 16
    $region225: #{tpu_custom_call.1} parent=1 // pred_fallthru
      _
    // Predicated region
    $region226: #{tpu_custom_call.1} parent=1 // pred_check
      _
    $region227: #{tpu_custom_call.1} parent=1 // pred_check_branch
      %468 = sbr.rel (0) target = $region229
    $region228: #{tpu_custom_call.1} parent=1 // pred_region
      %469 = dma.done [#allocation27], 16
    $region229: #{tpu_custom_call.1} parent=1 // pred_fallthru
      _
    // Predicated region
    $region230: #{tpu_custom_call.1} parent=1 // pred_check
      _
    $region231: #{tpu_custom_call.1} parent=1 // pred_check_branch
      %471 = sbr.rel (0) target = $region233
    $region232: #{tpu_custom_call.1} parent=1 // pred_region
      %472 = dma.done [#allocation27], 16
    $region233: #{tpu_custom_call.1} parent=1 // pred_fallthru
      _
    // Predicated region
    $region234: #{tpu_custom_call.1} parent=1 // pred_check
      _
    $region235: #{tpu_custom_call.1} parent=1 // pred_check_branch
      %474 = sbr.rel (0) target = $region237
    $region236: #{tpu_custom_call.1} parent=1 // pred_region
      %475 = dma.done [#allocation30], 16
    $region237: #{tpu_custom_call.1} parent=1 // pred_fallthru
      _
    // Predicated region
    $region238: #{tpu_custom_call.1} parent=1 // pred_check
      _
    $region239: #{tpu_custom_call.1} parent=1 // pred_check_branch
      %477 = sbr.rel (0) target = $region241
    $region240: #{tpu_custom_call.1} parent=1 // pred_region
      %478 = dma.done [#allocation30], 16
    $region241: #{tpu_custom_call.1} parent=1 // pred_fallthru
      _
    // Predicated region
    $region242: #{tpu_custom_call.1} parent=1 // pred_check
      _
    $region243: #{tpu_custom_call.1} parent=1 // pred_check_branch
      %480 = sbr.rel (0) target = $region245
    $region244: #{tpu_custom_call.1} parent=1 // pred_region
      %481 = dma.done [#allocation33], 16
    $region245: #{tpu_custom_call.1} parent=1 // pred_fallthru
      _
    // Predicated region
    $region246: #{tpu_custom_call.1} parent=1 // pred_check
      _
    $region247: #{tpu_custom_call.1} parent=1 // pred_check_branch
      %483 = sbr.rel (0) target = $region249
    $region248: #{tpu_custom_call.1} parent=1 // pred_region
      %484 = dma.done [#allocation33], 16
    $region249: #{tpu_custom_call.1} parent=1 // pred_fallthru
      _
    // Predicated region
    $region250: #{tpu_custom_call.1} parent=1 // pred_check
      _
    $region251: #{tpu_custom_call.1} parent=1 // pred_check_branch
      %486 = sbr.rel (0) target = $region253
    $region252: #{tpu_custom_call.1} parent=1 // pred_region
      %487 = dma.done [#allocation36], 512
    $region253: #{tpu_custom_call.1} parent=1 // pred_fallthru
      _
    // Predicated region
    $region254: #{tpu_custom_call.1} parent=1 // pred_check
      _
    $region255: #{tpu_custom_call.1} parent=1 // pred_check_branch
      %489 = sbr.rel (0) target = $region257
    $region256: #{tpu_custom_call.1} parent=1 // pred_region
      %490 = dma.done [#allocation36], 512
    $region257: #{tpu_custom_call.1} parent=1 // pred_fallthru
      _
    // Predicated region
    $region258: #{tpu_custom_call.1} parent=1 // pred_check
      _
    $region259: #{tpu_custom_call.1} parent=1 // pred_check_branch
      %492 = sbr.rel (0) target = $region261
    $region260: #{tpu_custom_call.1} parent=1 // pred_region
      %493 = dma.done [#allocation39], 16
    $region261: #{tpu_custom_call.1} parent=1 // pred_fallthru
      _
    // Predicated region
    $region262: #{tpu_custom_call.1} parent=1 // pred_check
      _
    $region263: #{tpu_custom_call.1} parent=1 // pred_check_branch
      %495 = sbr.rel (0) target = $region265
    $region264: #{tpu_custom_call.1} parent=1 // pred_region
      %496 = dma.done [#allocation39], 512
    $region265: #{tpu_custom_call.1} parent=1 // pred_fallthru
      _
    // Predicated region
    $region266: #{tpu_custom_call.1} parent=1 // pred_check
      _
    $region267: #{tpu_custom_call.1} parent=1 // pred_check_branch
      %498 = sbr.rel (0) target = $region269
    $region268: #{tpu_custom_call.1} parent=1 // pred_region
      %499 = dma.done [#allocation42], 16
    $region269: #{tpu_custom_call.1} parent=1 // pred_fallthru
      _
    // Predicated region
    $region270: #{tpu_custom_call.1} parent=1 // pred_check
      _
    $region271: #{tpu_custom_call.1} parent=1 // pred_check_branch
      %501 = sbr.rel (0) target = $region273
    $region272: #{tpu_custom_call.1} parent=1 // pred_region
      %502 = dma.done [#allocation42], 512
    $region273: #{tpu_custom_call.1} parent=1 // pred_fallthru
      _
    // Predicated region
    $region274: #{tpu_custom_call.1} parent=1 // pred_check
      _
    $region275: #{tpu_custom_call.1} parent=1 // pred_check_branch
      %504 = sbr.rel (0) target = $region277
    $region276: #{tpu_custom_call.1} parent=1 // pred_region
      %505 = dma.done [#allocation45], 512
    $region277: #{tpu_custom_call.1} parent=1 // pred_fallthru
      _
    %v507 = vld [vmem:[#allocation2] sm:$0xff]
    %v508 = vld [vmem:[#allocation2 + $0x8] sm:$0xff]
    %v509 = vpack.c.bf16 %v508, %v507
    %v510 = vld [vmem:[%s5] sm:$0xff]
    %v511 = vld [vmem:[%s5 + $0x8] sm:$0xff]
    %v512 = vld [vmem:[%s5 + $0x10] sm:$0xff]
    %v513 = vld [vmem:[%s5 + $0x18] sm:$0xff]
    %v514 = vpack.c.bf16 %v511, %v510
    %v515 = vpack.c.bf16 %v513, %v512
    %v516 = vld [vmem:[%s7] sm:$0xff]
    %v517 = vld [vmem:[%s7 + $0x8] sm:$0xff]
    %v518 = vld [vmem:[%s7 + $0x10] sm:$0xff]
    %v519 = vld [vmem:[%s7 + $0x18] sm:$0xff]
    %v520 = vpack.c.bf16 %v517, %v516
    %v521 = vpack.c.bf16 %v519, %v518
    %v522 = vld [vmem:[%s1] sm:$0xff]
    %v523 = vld [vmem:[%s1 + $0x8] sm:$0xff]
    %v524 = vld [vmem:[#allocation5] sm:$0xff]
    %v525 = vpack.c.bf16 %v523, %v522
    %v526 = vpack.c.bf16 %v524, %v524
    %v527 = vld [vmem:[#allocation7] sm:$0x1]
    %v529 = vlaneseq
    %v530 = vshrl.u32 %v529, 7
    %v531 = vsub.s32 0, %v530
    %v532 = vrot.slane %v527, %v531
    %vm534 = vcmask 64512
    %v536 = vsel %vm534, %v525, 0
    %vm538 = vcmask 1043456
    %v540 = vsel %vm538, %v526, 0
    %542 = vmatprep.subr.bf16.mxu0 0
    %543 = vmatpush1.bf16.msra.mxu0 %v540
    %544 = vmatprep.subr.bf16.mxu0 0
    %545 = vmatpush1.bf16.msra.mxu0 0
    %546 = vmatprep.subr.bf16.mxu0 0
    %547 = vmatpush1.bf16.msra.mxu0 0
    %548 = vmatprep.subr.bf16.mxu0 0
    %549 = vmatpush1.bf16.msra.mxu0 0
    %550 = vmatprep.subr.bf16.mxu0 0
    %551 = vmatpush1.bf16.msra.mxu0 0
    %552 = vmatprep.subr.bf16.mxu0 0
    %553 = vmatpush1.bf16.msra.mxu0 0
    %554 = vmatprep.subr.bf16.mxu0 0
    %555 = vmatpush1.bf16.msra.mxu0 0
    %556 = vmatprep.subr.bf16.mxu0 0
    %557 = vmatpush1.bf16.msra.mxu0 0
    %558 = vmatprep.subr.bf16.mxu0 0
    %559 = vmatpush1.bf16.msra.mxu0 0
    %560 = vmatprep.subr.bf16.mxu0 0
    %561 = vmatpush1.bf16.msra.mxu0 0
    %562 = vmatprep.subr.bf16.mxu0 0
    %563 = vmatpush1.bf16.msra.mxu0 0
    %564 = vmatprep.subr.bf16.mxu0 0
    %565 = vmatpush1.bf16.msra.mxu0 0
    %566 = vmatprep.subr.bf16.mxu0 0
    %567 = vmatpush1.bf16.msra.mxu0 0
    %568 = vmatprep.subr.bf16.mxu0 0
    %569 = vmatpush1.bf16.msra.mxu0 0
    %570 = vmatprep.subr.bf16.mxu0 0
    %571 = vmatpush1.bf16.msra.mxu0 0
    %572 = vmatprep.subr.bf16.mxu0 0
    %573 = vmatpush1.bf16.msra.mxu0 0
    %574 = vmatprep.mubr.bf16.mxu0 0
    %575 = vmatmul.mubr.bf16.gmra.mrb[0].mxu0 %v536
    %v576 = vpop.f32.mrb[0].mxu0
    %v577 = vadd.f32 %v532, %v576
    %v578 = vpop.f32.mrb[0].mxu0
    %v579 = vpop.f32.mrb[0].mxu0
    %v580 = vadd.f32 %v532, %v579
    %v581 = vpop.f32.mrb[0].mxu0
    %582 = vdwg.mxu0
    %v583 = vpack.c.bf16 %v580, %v577
    %vm584 = vcmask 130048
    %v586 = vsel %vm584, %v514, 0
    %v589 = vsel %vm584, %v515, 0
    %591 = vmatprep.subr.bf16.mxu0 0
    %592 = vmatpush1.bf16.msra.mxu0 %v583
    %593 = vmatprep.subr.bf16.mxu0 0
    %594 = vmatpush1.bf16.msra.mxu0 0
    %595 = vmatprep.subr.bf16.mxu0 0
    %596 = vmatpush1.bf16.msra.mxu0 0
    %597 = vmatprep.subr.bf16.mxu0 0
    %598 = vmatpush1.bf16.msra.mxu0 0
    %599 = vmatprep.subr.bf16.mxu0 0
    %600 = vmatpush1.bf16.msra.mxu0 0
    %601 = vmatprep.subr.bf16.mxu0 0
    %602 = vmatpush1.bf16.msra.mxu0 0
    %603 = vmatprep.subr.bf16.mxu0 0
    %604 = vmatpush1.bf16.msra.mxu0 0
    %605 = vmatprep.subr.bf16.mxu0 0
    %606 = vmatpush1.bf16.msra.mxu0 0
    %607 = vmatprep.subr.bf16.mxu0 0
    %608 = vmatpush1.bf16.msra.mxu0 0
    %609 = vmatprep.subr.bf16.mxu0 0
    %610 = vmatpush1.bf16.msra.mxu0 0
    %611 = vmatprep.subr.bf16.mxu0 0
    %612 = vmatpush1.bf16.msra.mxu0 0
    %613 = vmatprep.subr.bf16.mxu0 0
    %614 = vmatpush1.bf16.msra.mxu0 0
    %615 = vmatprep.subr.bf16.mxu0 0
    %616 = vmatpush1.bf16.msra.mxu0 0
    %617 = vmatprep.subr.bf16.mxu0 0
    %618 = vmatpush1.bf16.msra.mxu0 0
    %619 = vmatprep.subr.bf16.mxu0 0
    %620 = vmatpush1.bf16.msra.mxu0 0
    %621 = vmatprep.subr.bf16.mxu0 0
    %622 = vmatpush1.bf16.msra.mxu0 0
    %623 = vmatprep.mubr.bf16.mxu0 0
    %624 = vmatmul.mubr.bf16.gmra.mrb[0].mxu0 %v586
    %v625 = vpop.f32.mrb[0].mxu0
    %v626 = vadd.f32 0.0, %v625
    %v627 = vpop.f32.mrb[0].mxu0
    %v628 = vpop.f32.mrb[0].mxu0
    %v629 = vadd.f32 0.0, %v628
    %v630 = vpop.f32.mrb[0].mxu0
    %631 = vmatprep.mubr.bf16.mxu0 0
    %632 = vmatmul.mubr.bf16.gmra.mrb[0].mxu0 %v589
    %v633 = vpop.f32.mrb[0].mxu0
    %v634 = vadd.f32 0.0, %v633
    %v635 = vpop.f32.mrb[0].mxu0
    %v636 = vpop.f32.mrb[0].mxu0
    %v637 = vadd.f32 0.0, %v636
    %v638 = vpop.f32.mrb[0].mxu0
    %639 = vdwg.mxu0
    %v641 = vsel %vm584, %v520, 0
    %v644 = vsel %vm584, %v521, 0
    %646 = vmatprep.subr.bf16.mxu0 0
    %647 = vmatpush1.bf16.msra.mxu0 %v583
    %648 = vmatprep.subr.bf16.mxu0 0
    %649 = vmatpush1.bf16.msra.mxu0 0
    %650 = vmatprep.subr.bf16.mxu0 0
    %651 = vmatpush1.bf16.msra.mxu0 0
    %652 = vmatprep.subr.bf16.mxu0 0
    %653 = vmatpush1.bf16.msra.mxu0 0
    %654 = vmatprep.subr.bf16.mxu0 0
    %655 = vmatpush1.bf16.msra.mxu0 0
    %656 = vmatprep.subr.bf16.mxu0 0
    %657 = vmatpush1.bf16.msra.mxu0 0
    %658 = vmatprep.subr.bf16.mxu0 0
    %659 = vmatpush1.bf16.msra.mxu0 0
    %660 = vmatprep.subr.bf16.mxu0 0
    %661 = vmatpush1.bf16.msra.mxu0 0
    %662 = vmatprep.subr.bf16.mxu0 0
    %663 = vmatpush1.bf16.msra.mxu0 0
    %664 = vmatprep.subr.bf16.mxu0 0
    %665 = vmatpush1.bf16.msra.mxu0 0
    %666 = vmatprep.subr.bf16.mxu0 0
    %667 = vmatpush1.bf16.msra.mxu0 0
    %668 = vmatprep.subr.bf16.mxu0 0
    %669 = vmatpush1.bf16.msra.mxu0 0
    %670 = vmatprep.subr.bf16.mxu0 0
    %671 = vmatpush1.bf16.msra.mxu0 0
    %672 = vmatprep.subr.bf16.mxu0 0
    %673 = vmatpush1.bf16.msra.mxu0 0
    %674 = vmatprep.subr.bf16.mxu0 0
    %675 = vmatpush1.bf16.msra.mxu0 0
    %676 = vmatprep.subr.bf16.mxu0 0
    %677 = vmatpush1.bf16.msra.mxu0 0
    %678 = vmatprep.mubr.bf16.mxu0 0
    %679 = vmatmul.mubr.bf16.gmra.mrb[0].mxu0 %v641
    %v680 = vpop.f32.mrb[0].mxu0
    %v681 = vadd.f32 0.0, %v680
    %v682 = vpop.f32.mrb[0].mxu0
    %v683 = vpop.f32.mrb[0].mxu0
    %v684 = vadd.f32 0.0, %v683
    %v685 = vpop.f32.mrb[0].mxu0
    %686 = vmatprep.mubr.bf16.mxu0 0
    %687 = vmatmul.mubr.bf16.gmra.mrb[0].mxu0 %v644
    %v688 = vpop.f32.mrb[0].mxu0
    %v689 = vadd.f32 0.0, %v688
    %v690 = vpop.f32.mrb[0].mxu0
    %v691 = vpop.f32.mrb[0].mxu0
    %v692 = vadd.f32 0.0, %v691
    %v693 = vpop.f32.mrb[0].mxu0
    %694 = vdwg.mxu0
    %v695 = vld [vmem:[%s53] sm:$0xff]
    %v696 = vld [vmem:[%s53 + $0x8] sm:$0xff]
    %v697 = vld [vmem:[%s53 + $0x10] sm:$0xff]
    %v698 = vld [vmem:[%s53 + $0x18] sm:$0xff]
    %v699 = vpack.c.bf16 %v629, %v626
    %v700 = vpack.c.bf16 %v637, %v634
    %v701 = vpack.c.bf16 %v696, %v695
    %v702 = vpack.c.bf16 %v698, %v697
    %v703 = vld [vmem:[%s55] sm:$0xff]
    %v704 = vld [vmem:[%s55 + $0x8] sm:$0xff]
    %v705 = vld [vmem:[%s55 + $0x10] sm:$0xff]
    %v706 = vld [vmem:[%s55 + $0x18] sm:$0xff]
    %v707 = vpack.c.bf16 %v684, %v681
    %v708 = vpack.c.bf16 %v692, %v689
    %v709 = vpack.c.bf16 %v704, %v703
    %v710 = vpack.c.bf16 %v706, %v705
    %vm711 = vcmask 261120
    %v713 = vsel %vm711, %v707, 0
    %v716 = vsel %vm711, %v708, 0
    %718 = vmatprep.subr.bf16.mxu0 0
    %719 = vmatpush1.bf16.msra.mxu0 %v709
    %720 = vmatprep.subr.bf16.mxu0 0
    %721 = vmatpush1.bf16.msra.mxu0 %v710
    %722 = vmatprep.subr.bf16.mxu0 0
    %723 = vmatpush1.bf16.msra.mxu0 0
    %724 = vmatprep.subr.bf16.mxu0 0
    %725 = vmatpush1.bf16.msra.mxu0 0
    %726 = vmatprep.subr.bf16.mxu0 0
    %727 = vmatpush1.bf16.msra.mxu0 0
    %728 = vmatprep.subr.bf16.mxu0 0
    %729 = vmatpush1.bf16.msra.mxu0 0
    %730 = vmatprep.subr.bf16.mxu0 0
    %731 = vmatpush1.bf16.msra.mxu0 0
    %732 = vmatprep.subr.bf16.mxu0 0
    %733 = vmatpush1.bf16.msra.mxu0 0
    %734 = vmatprep.subr.bf16.mxu0 0
    %735 = vmatpush1.bf16.msra.mxu0 0
    %736 = vmatprep.subr.bf16.mxu0 0
    %737 = vmatpush1.bf16.msra.mxu0 0
    %738 = vmatprep.subr.bf16.mxu0 0
    %739 = vmatpush1.bf16.msra.mxu0 0
    %740 = vmatprep.subr.bf16.mxu0 0
    %741 = vmatpush1.bf16.msra.mxu0 0
    %742 = vmatprep.subr.bf16.mxu0 0
    %743 = vmatpush1.bf16.msra.mxu0 0
    %744 = vmatprep.subr.bf16.mxu0 0
    %745 = vmatpush1.bf16.msra.mxu0 0
    %746 = vmatprep.subr.bf16.mxu0 0
    %747 = vmatpush1.bf16.msra.mxu0 0
    %748 = vmatprep.subr.bf16.mxu0 0
    %749 = vmatpush1.bf16.msra.mxu0 0
    %750 = vmatprep.mubr.bf16.mxu0 0
    %751 = vmatmul.mubr.bf16.gmra.mrb[0].mxu0 %v713
    %v752 = vpop.f32.mrb[0].mxu0
    %v753 = vadd.f32 0.0, %v752
    %v754 = vpop.f32.mrb[0].mxu0
    %v755 = vpop.f32.mrb[0].mxu0
    %v756 = vadd.f32 0.0, %v755
    %v757 = vpop.f32.mrb[0].mxu0
    %758 = vmatprep.mubr.bf16.mxu0 0
    %759 = vmatmul.mubr.bf16.gmra.mrb[0].mxu0 %v716
    %v760 = vpop.f32.mrb[0].mxu0
    %v761 = vadd.f32 0.0, %v760
    %v762 = vpop.f32.mrb[0].mxu0
    %v763 = vpop.f32.mrb[0].mxu0
    %v764 = vadd.f32 0.0, %v763
    %v765 = vpop.f32.mrb[0].mxu0
    %766 = vdwg.mxu0
    %v768 = vsel %vm711, %v699, 0
    %v771 = vsel %vm711, %v700, 0
    %773 = vmatprep.subr.bf16.mxu0 0
    %774 = vmatpush1.bf16.msra.mxu0 %v701
    %775 = vmatprep.subr.bf16.mxu0 0
    %776 = vmatpush1.bf16.msra.mxu0 %v702
    %777 = vmatprep.subr.bf16.mxu0 0
    %778 = vmatpush1.bf16.msra.mxu0 0
    %779 = vmatprep.subr.bf16.mxu0 0
    %780 = vmatpush1.bf16.msra.mxu0 0
    %781 = vmatprep.subr.bf16.mxu0 0
    %782 = vmatpush1.bf16.msra.mxu0 0
    %783 = vmatprep.subr.bf16.mxu0 0
    %784 = vmatpush1.bf16.msra.mxu0 0
    %785 = vmatprep.subr.bf16.mxu0 0
    %786 = vmatpush1.bf16.msra.mxu0 0
    %787 = vmatprep.subr.bf16.mxu0 0
    %788 = vmatpush1.bf16.msra.mxu0 0
    %789 = vmatprep.subr.bf16.mxu0 0
    %790 = vmatpush1.bf16.msra.mxu0 0
    %791 = vmatprep.subr.bf16.mxu0 0
    %792 = vmatpush1.bf16.msra.mxu0 0
    %793 = vmatprep.subr.bf16.mxu0 0
    %794 = vmatpush1.bf16.msra.mxu0 0
    %795 = vmatprep.subr.bf16.mxu0 0
    %796 = vmatpush1.bf16.msra.mxu0 0
    %797 = vmatprep.subr.bf16.mxu0 0
    %798 = vmatpush1.bf16.msra.mxu0 0
    %799 = vmatprep.subr.bf16.mxu0 0
    %800 = vmatpush1.bf16.msra.mxu0 0
    %801 = vmatprep.subr.bf16.mxu0 0
    %802 = vmatpush1.bf16.msra.mxu0 0
    %803 = vmatprep.subr.bf16.mxu0 0
    %804 = vmatpush1.bf16.msra.mxu0 0
    %805 = vmatprep.mubr.bf16.mxu0 0
    %806 = vmatmul.mubr.bf16.gmra.mrb[0].mxu0 %v768
    %v807 = vpop.f32.mrb[0].mxu0
    %v808 = vadd.f32 %v753, %v807
    %v809 = vpop.f32.mrb[0].mxu0
    %v810 = vpop.f32.mrb[0].mxu0
    %v811 = vadd.f32 %v756, %v810
    %v812 = vpop.f32.mrb[0].mxu0
    %813 = vmatprep.mubr.bf16.mxu0 0
    %814 = vmatmul.mubr.bf16.gmra.mrb[0].mxu0 %v771
    %v815 = vpop.f32.mrb[0].mxu0
    %v816 = vadd.f32 %v761, %v815
    %v817 = vpop.f32.mrb[0].mxu0
    %v818 = vpop.f32.mrb[0].mxu0
    %v819 = vadd.f32 %v764, %v818
    %v820 = vpop.f32.mrb[0].mxu0
    %821 = vdwg.mxu0
    %v822 = vld [vmem:[#allocation32] sm:$0x1]
    %v824 = vlaneseq
    %v825 = vshrl.u32 %v824, 7
    %v826 = vsub.s32 0, %v825
    %v827 = vrot.slane %v822, %v826
    %v829 = vadd.f32 %v808, %v827
    %v830 = vadd.f32 %v811, %v827
    %v831 = vadd.f32 %v816, %v827
    %v832 = vadd.f32 %v819, %v827
    %v833 = vmax.f32 %v829, 0.0
    %v834 = vmax.f32 %v830, 0.0
    %v835 = vmax.f32 %v831, 0.0
    %v836 = vmax.f32 %v832, 0.0
    %v837 = vld [vmem:[%s59] sm:$0xff]
    %v838 = vld [vmem:[%s59 + $0x8] sm:$0xff]
    %v839 = vld [vmem:[%s59 + $0x10] sm:$0xff]
    %v840 = vld [vmem:[%s59 + $0x18] sm:$0xff]
    %v841 = vpack.c.bf16 %v834, %v833
    %v842 = vpack.c.bf16 %v836, %v835
    %v843 = vpack.c.bf16 %v838, %v837
    %v844 = vpack.c.bf16 %v840, %v839
    %v845 = vld [vmem:[#allocation34] sm:$0x1]
    %v847 = vlaneseq
    %v848 = vshrl.u32 %v847, 7
    %v849 = vsub.s32 0, %v848
    %v850 = vrot.slane %v845, %v849
    %v853 = vsel %vm711, %v841, 0
    %v856 = vsel %vm711, %v842, 0
    %858 = vmatprep.subr.bf16.mxu0 0
    %859 = vmatpush1.bf16.msra.mxu0 %v843
    %860 = vmatprep.subr.bf16.mxu0 0
    %861 = vmatpush1.bf16.msra.mxu0 %v844
    %862 = vmatprep.subr.bf16.mxu0 0
    %863 = vmatpush1.bf16.msra.mxu0 0
    %864 = vmatprep.subr.bf16.mxu0 0
    %865 = vmatpush1.bf16.msra.mxu0 0
    %866 = vmatprep.subr.bf16.mxu0 0
    %867 = vmatpush1.bf16.msra.mxu0 0
    %868 = vmatprep.subr.bf16.mxu0 0
    %869 = vmatpush1.bf16.msra.mxu0 0
    %870 = vmatprep.subr.bf16.mxu0 0
    %871 = vmatpush1.bf16.msra.mxu0 0
    %872 = vmatprep.subr.bf16.mxu0 0
    %873 = vmatpush1.bf16.msra.mxu0 0
    %874 = vmatprep.subr.bf16.mxu0 0
    %875 = vmatpush1.bf16.msra.mxu0 0
    %876 = vmatprep.subr.bf16.mxu0 0
    %877 = vmatpush1.bf16.msra.mxu0 0
    %878 = vmatprep.subr.bf16.mxu0 0
    %879 = vmatpush1.bf16.msra.mxu0 0
    %880 = vmatprep.subr.bf16.mxu0 0
    %881 = vmatpush1.bf16.msra.mxu0 0
    %882 = vmatprep.subr.bf16.mxu0 0
    %883 = vmatpush1.bf16.msra.mxu0 0
    %884 = vmatprep.subr.bf16.mxu0 0
    %885 = vmatpush1.bf16.msra.mxu0 0
    %886 = vmatprep.subr.bf16.mxu0 0
    %887 = vmatpush1.bf16.msra.mxu0 0
    %888 = vmatprep.subr.bf16.mxu0 0
    %889 = vmatpush1.bf16.msra.mxu0 0
    %890 = vmatprep.mubr.bf16.mxu0 0
    %891 = vmatmul.mubr.bf16.gmra.mrb[0].mxu0 %v853
    %v892 = vpop.f32.mrb[0].mxu0
    %v893 = vadd.f32 %v850, %v892
    %v894 = vpop.f32.mrb[0].mxu0
    %v895 = vpop.f32.mrb[0].mxu0
    %v896 = vadd.f32 %v850, %v895
    %v897 = vpop.f32.mrb[0].mxu0
    %898 = vmatprep.mubr.bf16.mxu0 0
    %899 = vmatmul.mubr.bf16.gmra.mrb[0].mxu0 %v856
    %v900 = vpop.f32.mrb[0].mxu0
    %v901 = vadd.f32 %v850, %v900
    %v902 = vpop.f32.mrb[0].mxu0
    %v903 = vpop.f32.mrb[0].mxu0
    %v904 = vadd.f32 %v850, %v903
    %v905 = vpop.f32.mrb[0].mxu0
    %906 = vdwg.mxu0
    %v908 = vsel %vm584, %v509, 0
    %910 = vmatprep.subr.bf16.mxu0 0
    %911 = vmatpush1.bf16.msra.mxu0 %v583
    %912 = vmatprep.subr.bf16.mxu0 0
    %913 = vmatpush1.bf16.msra.mxu0 0
    %914 = vmatprep.subr.bf16.mxu0 0
    %915 = vmatpush1.bf16.msra.mxu0 0
    %916 = vmatprep.subr.bf16.mxu0 0
    %917 = vmatpush1.bf16.msra.mxu0 0
    %918 = vmatprep.subr.bf16.mxu0 0
    %919 = vmatpush1.bf16.msra.mxu0 0
    %920 = vmatprep.subr.bf16.mxu0 0
    %921 = vmatpush1.bf16.msra.mxu0 0
    %922 = vmatprep.subr.bf16.mxu0 0
    %923 = vmatpush1.bf16.msra.mxu0 0
    %924 = vmatprep.subr.bf16.mxu0 0
    %925 = vmatpush1.bf16.msra.mxu0 0
    %926 = vmatprep.subr.bf16.mxu0 0
    %927 = vmatpush1.bf16.msra.mxu0 0
    %928 = vmatprep.subr.bf16.mxu0 0
    %929 = vmatpush1.bf16.msra.mxu0 0
    %930 = vmatprep.subr.bf16.mxu0 0
    %931 = vmatpush1.bf16.msra.mxu0 0
    %932 = vmatprep.subr.bf16.mxu0 0
    %933 = vmatpush1.bf16.msra.mxu0 0
    %934 = vmatprep.subr.bf16.mxu0 0
    %935 = vmatpush1.bf16.msra.mxu0 0
    %936 = vmatprep.subr.bf16.mxu0 0
    %937 = vmatpush1.bf16.msra.mxu0 0
    %938 = vmatprep.subr.bf16.mxu0 0
    %939 = vmatpush1.bf16.msra.mxu0 0
    %940 = vmatprep.subr.bf16.mxu0 0
    %941 = vmatpush1.bf16.msra.mxu0 0
    %942 = vmatprep.mubr.bf16.mxu0 0
    %943 = vmatmul.mubr.bf16.gmra.mrb[0].mxu0 %v908
    %v944 = vpop.f32.mrb[0].mxu0
    %v945 = vadd.f32 %v577, %v944
    %v946 = vpop.f32.mrb[0].mxu0
    %v947 = vpop.f32.mrb[0].mxu0
    %v948 = vadd.f32 %v580, %v947
    %v949 = vpop.f32.mrb[0].mxu0
    %950 = vdwg.mxu0
    %v951 = vld [vmem:[%s13] sm:$0xff]
    %v952 = vld [vmem:[%s13 + $0x8] sm:$0xff]
    %v953 = vld [vmem:[%s13 + $0x10] sm:$0xff]
    %v954 = vld [vmem:[%s13 + $0x18] sm:$0xff]
    %v955 = vpack.c.bf16 %v948, %v945
    %v956 = vpack.c.bf16 %v952, %v951
    %v957 = vpack.c.bf16 %v954, %v953
    %v958 = vld [vmem:[#allocation8] sm:$0x1]
    %v960 = vlaneseq
    %v961 = vshrl.u32 %v960, 7
    %v962 = vsub.s32 0, %v961
    %v963 = vrot.slane %v958, %v962
    %v966 = vsel %vm711, %v955, 0
    %968 = vmatprep.subr.bf16.mxu0 0
    %969 = vmatpush1.bf16.msra.mxu0 %v956
    %970 = vmatprep.subr.bf16.mxu0 0
    %971 = vmatpush1.bf16.msra.mxu0 %v957
    %972 = vmatprep.subr.bf16.mxu0 0
    %973 = vmatpush1.bf16.msra.mxu0 0
    %974 = vmatprep.subr.bf16.mxu0 0
    %975 = vmatpush1.bf16.msra.mxu0 0
    %976 = vmatprep.subr.bf16.mxu0 0
    %977 = vmatpush1.bf16.msra.mxu0 0
    %978 = vmatprep.subr.bf16.mxu0 0
    %979 = vmatpush1.bf16.msra.mxu0 0
    %980 = vmatprep.subr.bf16.mxu0 0
    %981 = vmatpush1.bf16.msra.mxu0 0
    %982 = vmatprep.subr.bf16.mxu0 0
    %983 = vmatpush1.bf16.msra.mxu0 0
    %984 = vmatprep.subr.bf16.mxu0 0
    %985 = vmatpush1.bf16.msra.mxu0 0
    %986 = vmatprep.subr.bf16.mxu0 0
    %987 = vmatpush1.bf16.msra.mxu0 0
    %988 = vmatprep.subr.bf16.mxu0 0
    %989 = vmatpush1.bf16.msra.mxu0 0
    %990 = vmatprep.subr.bf16.mxu0 0
    %991 = vmatpush1.bf16.msra.mxu0 0
    %992 = vmatprep.subr.bf16.mxu0 0
    %993 = vmatpush1.bf16.msra.mxu0 0
    %994 = vmatprep.subr.bf16.mxu0 0
    %995 = vmatpush1.bf16.msra.mxu0 0
    %996 = vmatprep.subr.bf16.mxu0 0
    %997 = vmatpush1.bf16.msra.mxu0 0
    %998 = vmatprep.subr.bf16.mxu0 0
    %999 = vmatpush1.bf16.msra.mxu0 0
    %1000 = vmatprep.mubr.bf16.mxu0 0
    %1001 = vmatmul.mubr.bf16.gmra.mrb[0].mxu0 %v966
    %v1002 = vpop.f32.mrb[0].mxu0
    %v1003 = vadd.f32 %v963, %v1002
    %v1004 = vpop.f32.mrb[0].mxu0
    %v1005 = vpop.f32.mrb[0].mxu0
    %v1006 = vadd.f32 %v963, %v1005
    %v1007 = vpop.f32.mrb[0].mxu0
    %1008 = vdwg.mxu0
    %v1009 = vsel %vm711, %v1003, 0.0
    %v1010 = vsel %vm711, %v1006, 0.0
    %v1011 = vadd.f32 %v1009, %v1010
    %v1012 = vrot.slane %v1011, 4
    %v1013 = vadd.f32 %v1011, %v1012
    %v1014 = vrot.slane %v1013, 2
    %v1015 = vadd.f32 %v1013, %v1014
    %v1016 = vrot.slane %v1015, 1
    %v1017 = vadd.f32 %v1015, %v1016
    %v1018 = vrcp.pop 16.0
    %v1019 = vmul.f32 %v1017, %v1018
    %v1020 = vsub.f32 %v1003, %v1019
    %v1021 = vsub.f32 %v1006, %v1019
    %v1022 = vmul.f32 %v1020, %v1020
    %v1023 = vmul.f32 %v1021, %v1021
    %v1024 = vsel %vm711, %v1022, 0.0
    %v1025 = vsel %vm711, %v1023, 0.0
    %v1026 = vadd.f32 %v1024, %v1025
    %v1027 = vrot.slane %v1026, 4
    %v1028 = vadd.f32 %v1026, %v1027
    %v1029 = vrot.slane %v1028, 2
    %v1030 = vadd.f32 %v1028, %v1029
    %v1031 = vrot.slane %v1030, 1
    %v1032 = vadd.f32 %v1030, %v1031
    %v1033 = vmul.f32 %v1032, %v1018
    %v1034 = vadd.f32 %v1033, 1e-05
    %v1035 = vrsqrt.pop %v1034
    %v1036 = vmul.f32 %v1020, %v1035
    %v1037 = vmul.f32 %v1021, %v1035
    %v1038 = vld [vmem:[#allocation10] sm:$0x1]
    %v1040 = vlaneseq
    %v1041 = vshrl.u32 %v1040, 7
    %v1042 = vsub.s32 0, %v1041
    %v1043 = vrot.slane %v1038, %v1042
    %v1045 = vmul.f32 %v1036, %v1043
    %v1046 = vmul.f32 %v1037, %v1043
    %v1047 = vld [vmem:[#allocation11] sm:$0x1]
    %v1049 = vlaneseq
    %v1050 = vshrl.u32 %v1049, 7
    %v1051 = vsub.s32 0, %v1050
    %v1052 = vrot.slane %v1047, %v1051
    %v1054 = vadd.f32 %v1045, %v1052
    %v1055 = vadd.f32 %v1046, %v1052
    %v1056 = vmax.f32 %v1054, 0.0
    %v1057 = vmax.f32 %v1055, 0.0
    %v1058 = vld [vmem:[%s21] sm:$0xff]
    %v1059 = vld [vmem:[%s21 + $0x8] sm:$0xff]
    %v1060 = vld [vmem:[%s21 + $0x10] sm:$0xff]
    %v1061 = vld [vmem:[%s21 + $0x18] sm:$0xff]
    %v1062 = vpack.c.bf16 %v1057, %v1056
    %v1063 = vpack.c.bf16 %v1059, %v1058
    %v1064 = vpack.c.bf16 %v1061, %v1060
    %v1065 = vld [vmem:[#allocation13] sm:$0x1]
    %v1067 = vlaneseq
    %v1068 = vshrl.u32 %v1067, 7
    %v1069 = vsub.s32 0, %v1068
    %v1070 = vrot.slane %v1065, %v1069
    %v1073 = vsel %vm711, %v1062, 0
    %1075 = vmatprep.subr.bf16.mxu0 0
    %1076 = vmatpush1.bf16.msra.mxu0 %v1063
    %1077 = vmatprep.subr.bf16.mxu0 0
    %1078 = vmatpush1.bf16.msra.mxu0 %v1064
    %1079 = vmatprep.subr.bf16.mxu0 0
    %1080 = vmatpush1.bf16.msra.mxu0 0
    %1081 = vmatprep.subr.bf16.mxu0 0
    %1082 = vmatpush1.bf16.msra.mxu0 0
    %1083 = vmatprep.subr.bf16.mxu0 0
    %1084 = vmatpush1.bf16.msra.mxu0 0
    %1085 = vmatprep.subr.bf16.mxu0 0
    %1086 = vmatpush1.bf16.msra.mxu0 0
    %1087 = vmatprep.subr.bf16.mxu0 0
    %1088 = vmatpush1.bf16.msra.mxu0 0
    %1089 = vmatprep.subr.bf16.mxu0 0
    %1090 = vmatpush1.bf16.msra.mxu0 0
    %1091 = vmatprep.subr.bf16.mxu0 0
    %1092 = vmatpush1.bf16.msra.mxu0 0
    %1093 = vmatprep.subr.bf16.mxu0 0
    %1094 = vmatpush1.bf16.msra.mxu0 0
    %1095 = vmatprep.subr.bf16.mxu0 0
    %1096 = vmatpush1.bf16.msra.mxu0 0
    %1097 = vmatprep.subr.bf16.mxu0 0
    %1098 = vmatpush1.bf16.msra.mxu0 0
    %1099 = vmatprep.subr.bf16.mxu0 0
    %1100 = vmatpush1.bf16.msra.mxu0 0
    %1101 = vmatprep.subr.bf16.mxu0 0
    %1102 = vmatpush1.bf16.msra.mxu0 0
    %1103 = vmatprep.subr.bf16.mxu0 0
    %1104 = vmatpush1.bf16.msra.mxu0 0
    %1105 = vmatprep.subr.bf16.mxu0 0
    %1106 = vmatpush1.bf16.msra.mxu0 0
    %1107 = vmatprep.mubr.bf16.mxu0 0
    %1108 = vmatmul.mubr.bf16.gmra.mrb[0].mxu0 %v1073
    %v1109 = vpop.f32.mrb[0].mxu0
    %v1110 = vadd.f32 %v1070, %v1109
    %v1111 = vpop.f32.mrb[0].mxu0
    %v1112 = vpop.f32.mrb[0].mxu0
    %v1113 = vadd.f32 %v1070, %v1112
    %v1114 = vpop.f32.mrb[0].mxu0
    %1115 = vdwg.mxu0
    %v1116 = vsel %vm711, %v1110, 0.0
    %v1117 = vsel %vm711, %v1113, 0.0
    %v1118 = vadd.f32 %v1116, %v1117
    %v1119 = vrot.slane %v1118, 4
    %v1120 = vadd.f32 %v1118, %v1119
    %v1121 = vrot.slane %v1120, 2
    %v1122 = vadd.f32 %v1120, %v1121
    %v1123 = vrot.slane %v1122, 1
    %v1124 = vadd.f32 %v1122, %v1123
    %v1125 = vmul.f32 %v1124, %v1018
    %v1126 = vsub.f32 %v1110, %v1125
    %v1127 = vsub.f32 %v1113, %v1125
    %v1128 = vmul.f32 %v1126, %v1126
    %v1129 = vmul.f32 %v1127, %v1127
    %v1130 = vsel %vm711, %v1128, 0.0
    %v1131 = vsel %vm711, %v1129, 0.0
    %v1132 = vadd.f32 %v1130, %v1131
    %v1133 = vrot.slane %v1132, 4
    %v1134 = vadd.f32 %v1132, %v1133
    %v1135 = vrot.slane %v1134, 2
    %v1136 = vadd.f32 %v1134, %v1135
    %v1137 = vrot.slane %v1136, 1
    %v1138 = vadd.f32 %v1136, %v1137
    %v1139 = vmul.f32 %v1138, %v1018
    %v1140 = vadd.f32 %v1139, 1e-05
    %v1141 = vrsqrt.pop %v1140
    %v1142 = vmul.f32 %v1126, %v1141
    %v1143 = vmul.f32 %v1127, %v1141
    %v1144 = vld [vmem:[#allocation14] sm:$0x1]
    %v1146 = vlaneseq
    %v1147 = vshrl.u32 %v1146, 7
    %v1148 = vsub.s32 0, %v1147
    %v1149 = vrot.slane %v1144, %v1148
    %v1151 = vmul.f32 %v1142, %v1149
    %v1152 = vmul.f32 %v1143, %v1149
    %v1153 = vld [vmem:[#allocation16] sm:$0x1]
    %v1155 = vlaneseq
    %v1156 = vshrl.u32 %v1155, 7
    %v1157 = vsub.s32 0, %v1156
    %v1158 = vrot.slane %v1153, %v1157
    %v1160 = vadd.f32 %v1151, %v1158
    %v1161 = vadd.f32 %v1152, %v1158
    %v1162 = vmax.f32 %v1160, 0.0
    %v1163 = vmax.f32 %v1161, 0.0
    %v1164 = vsel %vm711, %v1162, 0.0
    %v1165 = vsel %vm711, %v1163, 0.0
    %v1166 = vadd.f32 %v1164, %v1165
    %v1167 = vrot.slane %v1166, 4
    %v1168 = vadd.f32 %v1166, %v1167
    %v1169 = vrot.slane %v1168, 2
    %v1170 = vadd.f32 %v1168, %v1169
    %v1171 = vrot.slane %v1170, 1
    %v1172 = vadd.f32 %v1170, %v1171
    %v1173 = vmul.f32 %v1172, %v1018
    %v1174 = vsub.f32 %v1162, %v1173
    %v1175 = vsub.f32 %v1163, %v1173
    %v1176 = vmul.f32 %v1174, %v1174
    %v1177 = vmul.f32 %v1175, %v1175
    %v1178 = vsel %vm711, %v1176, 0.0
    %v1179 = vsel %vm711, %v1177, 0.0
    %v1180 = vadd.f32 %v1178, %v1179
    %v1181 = vrot.slane %v1180, 4
    %v1182 = vadd.f32 %v1180, %v1181
    %v1183 = vrot.slane %v1182, 2
    %v1184 = vadd.f32 %v1182, %v1183
    %v1185 = vrot.slane %v1184, 1
    %v1186 = vadd.f32 %v1184, %v1185
    %v1187 = vmul.f32 %v1186, %v1018
    %v1188 = vadd.f32 %v1187, 1e-05
    %v1189 = vrsqrt.pop %v1188
    %v1190 = vmul.f32 %v1174, %v1189
    %v1191 = vmul.f32 %v1175, %v1189
    %v1192 = vld [vmem:[#allocation17] sm:$0x1]
    %v1194 = vlaneseq
    %v1195 = vshrl.u32 %v1194, 7
    %v1196 = vsub.s32 0, %v1195
    %v1197 = vrot.slane %v1192, %v1196
    %v1199 = vmul.f32 %v1190, %v1197
    %v1200 = vmul.f32 %v1191, %v1197
    %v1201 = vld [vmem:[#allocation19] sm:$0x1]
    %v1203 = vlaneseq
    %v1204 = vshrl.u32 %v1203, 7
    %v1205 = vsub.s32 0, %v1204
    %v1206 = vrot.slane %v1201, %v1205
    %v1208 = vadd.f32 %v1199, %v1206
    %v1209 = vadd.f32 %v1200, %v1206
    %v1210 = vmax.f32 %v1208, 0.0
    %v1211 = vmax.f32 %v1209, 0.0
    %v1212 = vpack.c.bf16 %v1211, %v1210
    %1213 = vmatprep.subr.bf16.mxu0 0
    %1214 = vmatpush1.bf16.msra.mxu0 %v1212
    %1215 = vmatprep.subr.bf16.mxu0 0
    %1216 = vmatpush1.bf16.msra.mxu0 0
    %1217 = vmatprep.subr.bf16.mxu0 0
    %1218 = vmatpush1.bf16.msra.mxu0 0
    %1219 = vmatprep.subr.bf16.mxu0 0
    %1220 = vmatpush1.bf16.msra.mxu0 0
    %1221 = vmatprep.subr.bf16.mxu0 0
    %1222 = vmatpush1.bf16.msra.mxu0 0
    %1223 = vmatprep.subr.bf16.mxu0 0
    %1224 = vmatpush1.bf16.msra.mxu0 0
    %1225 = vmatprep.subr.bf16.mxu0 0
    %1226 = vmatpush1.bf16.msra.mxu0 0
    %1227 = vmatprep.subr.bf16.mxu0 0
    %1228 = vmatpush1.bf16.msra.mxu0 0
    %1229 = vmatprep.subr.bf16.mxu0 0
    %1230 = vmatpush1.bf16.msra.mxu0 0
    %1231 = vmatprep.subr.bf16.mxu0 0
    %1232 = vmatpush1.bf16.msra.mxu0 0
    %1233 = vmatprep.subr.bf16.mxu0 0
    %1234 = vmatpush1.bf16.msra.mxu0 0
    %1235 = vmatprep.subr.bf16.mxu0 0
    %1236 = vmatpush1.bf16.msra.mxu0 0
    %1237 = vmatprep.subr.bf16.mxu0 0
    %1238 = vmatpush1.bf16.msra.mxu0 0
    %1239 = vmatprep.subr.bf16.mxu0 0
    %1240 = vmatpush1.bf16.msra.mxu0 0
    %1241 = vmatprep.subr.bf16.mxu0 0
    %1242 = vmatpush1.bf16.msra.mxu0 0
    %1243 = vmatprep.subr.bf16.mxu0 0
    %1244 = vmatpush1.bf16.msra.mxu0 0
    %1245 = vmatprep.mubr.bf16.mxu0 0
    %1246 = vmatmul.mubr.bf16.gmra.mrb[0].mxu0 %v586
    %v1247 = vpop.f32.mrb[0].mxu0
    %v1248 = vadd.f32 0.0, %v1247
    %v1249 = vpop.f32.mrb[0].mxu0
    %v1250 = vpop.f32.mrb[0].mxu0
    %v1251 = vadd.f32 0.0, %v1250
    %v1252 = vpop.f32.mrb[0].mxu0
    %1253 = vmatprep.mubr.bf16.mxu0 0
    %1254 = vmatmul.mubr.bf16.gmra.mrb[0].mxu0 %v589
    %v1255 = vpop.f32.mrb[0].mxu0
    %v1256 = vadd.f32 0.0, %v1255
    %v1257 = vpop.f32.mrb[0].mxu0
    %v1258 = vpop.f32.mrb[0].mxu0
    %v1259 = vadd.f32 0.0, %v1258
    %v1260 = vpop.f32.mrb[0].mxu0
    %1261 = vdwg.mxu0
    %1262 = vmatprep.subr.bf16.mxu0 0
    %1263 = vmatpush1.bf16.msra.mxu0 %v1212
    %1264 = vmatprep.subr.bf16.mxu0 0
    %1265 = vmatpush1.bf16.msra.mxu0 0
    %1266 = vmatprep.subr.bf16.mxu0 0
    %1267 = vmatpush1.bf16.msra.mxu0 0
    %1268 = vmatprep.subr.bf16.mxu0 0
    %1269 = vmatpush1.bf16.msra.mxu0 0
    %1270 = vmatprep.subr.bf16.mxu0 0
    %1271 = vmatpush1.bf16.msra.mxu0 0
    %1272 = vmatprep.subr.bf16.mxu0 0
    %1273 = vmatpush1.bf16.msra.mxu0 0
    %1274 = vmatprep.subr.bf16.mxu0 0
    %1275 = vmatpush1.bf16.msra.mxu0 0
    %1276 = vmatprep.subr.bf16.mxu0 0
    %1277 = vmatpush1.bf16.msra.mxu0 0
    %1278 = vmatprep.subr.bf16.mxu0 0
    %1279 = vmatpush1.bf16.msra.mxu0 0
    %1280 = vmatprep.subr.bf16.mxu0 0
    %1281 = vmatpush1.bf16.msra.mxu0 0
    %1282 = vmatprep.subr.bf16.mxu0 0
    %1283 = vmatpush1.bf16.msra.mxu0 0
    %1284 = vmatprep.subr.bf16.mxu0 0
    %1285 = vmatpush1.bf16.msra.mxu0 0
    %1286 = vmatprep.subr.bf16.mxu0 0
    %1287 = vmatpush1.bf16.msra.mxu0 0
    %1288 = vmatprep.subr.bf16.mxu0 0
    %1289 = vmatpush1.bf16.msra.mxu0 0
    %1290 = vmatprep.subr.bf16.mxu0 0
    %1291 = vmatpush1.bf16.msra.mxu0 0
    %1292 = vmatprep.subr.bf16.mxu0 0
    %1293 = vmatpush1.bf16.msra.mxu0 0
    %1294 = vmatprep.mubr.bf16.mxu0 0
    %1295 = vmatmul.mubr.bf16.gmra.mrb[0].mxu0 %v641
    %v1296 = vpop.f32.mrb[0].mxu0
    %v1297 = vadd.f32 0.0, %v1296
    %v1298 = vpop.f32.mrb[0].mxu0
    %v1299 = vpop.f32.mrb[0].mxu0
    %v1300 = vadd.f32 0.0, %v1299
    %v1301 = vpop.f32.mrb[0].mxu0
    %1302 = vmatprep.mubr.bf16.mxu0 0
    %1303 = vmatmul.mubr.bf16.gmra.mrb[0].mxu0 %v644
    %v1304 = vpop.f32.mrb[0].mxu0
    %v1305 = vadd.f32 0.0, %v1304
    %v1306 = vpop.f32.mrb[0].mxu0
    %v1307 = vpop.f32.mrb[0].mxu0
    %v1308 = vadd.f32 0.0, %v1307
    %v1309 = vpop.f32.mrb[0].mxu0
    %1310 = vdwg.mxu0
    %v1311 = vld [vmem:[#allocation35] sm:$0xff]
    %v1312 = vld [vmem:[#allocation35 + $0x8] sm:$0xff]
    %v1313 = vld [vmem:[#allocation35 + $0x10] sm:$0xff]
    %v1314 = vld [vmem:[#allocation35 + $0x18] sm:$0xff]
    %v1315 = vpack.c.bf16 %v1251, %v1248
    %v1316 = vpack.c.bf16 %v1259, %v1256
    %v1317 = vpack.c.bf16 %v1312, %v1311
    %v1318 = vpack.c.bf16 %v1314, %v1313
    %v1319 = vld [vmem:[#allocation37] sm:$0xff]
    %v1320 = vld [vmem:[#allocation37 + $0x8] sm:$0xff]
    %v1321 = vld [vmem:[#allocation37 + $0x10] sm:$0xff]
    %v1322 = vld [vmem:[#allocation37 + $0x18] sm:$0xff]
    %v1323 = vpack.c.bf16 %v1300, %v1297
    %v1324 = vpack.c.bf16 %v1308, %v1305
    %v1325 = vpack.c.bf16 %v1320, %v1319
    %v1326 = vpack.c.bf16 %v1322, %v1321
    %v1328 = vsel %vm711, %v1323, 0
    %v1331 = vsel %vm711, %v1324, 0
    %1333 = vmatprep.subr.bf16.mxu0 0
    %1334 = vmatpush1.bf16.msra.mxu0 %v1325
    %1335 = vmatprep.subr.bf16.mxu0 0
    %1336 = vmatpush1.bf16.msra.mxu0 %v1326
    %1337 = vmatprep.subr.bf16.mxu0 0
    %1338 = vmatpush1.bf16.msra.mxu0 0
    %1339 = vmatprep.subr.bf16.mxu0 0
    %1340 = vmatpush1.bf16.msra.mxu0 0
    %1341 = vmatprep.subr.bf16.mxu0 0
    %1342 = vmatpush1.bf16.msra.mxu0 0
    %1343 = vmatprep.subr.bf16.mxu0 0
    %1344 = vmatpush1.bf16.msra.mxu0 0
    %1345 = vmatprep.subr.bf16.mxu0 0
    %1346 = vmatpush1.bf16.msra.mxu0 0
    %1347 = vmatprep.subr.bf16.mxu0 0
    %1348 = vmatpush1.bf16.msra.mxu0 0
    %1349 = vmatprep.subr.bf16.mxu0 0
    %1350 = vmatpush1.bf16.msra.mxu0 0
    %1351 = vmatprep.subr.bf16.mxu0 0
    %1352 = vmatpush1.bf16.msra.mxu0 0
    %1353 = vmatprep.subr.bf16.mxu0 0
    %1354 = vmatpush1.bf16.msra.mxu0 0
    %1355 = vmatprep.subr.bf16.mxu0 0
    %1356 = vmatpush1.bf16.msra.mxu0 0
    %1357 = vmatprep.subr.bf16.mxu0 0
    %1358 = vmatpush1.bf16.msra.mxu0 0
    %1359 = vmatprep.subr.bf16.mxu0 0
    %1360 = vmatpush1.bf16.msra.mxu0 0
    %1361 = vmatprep.subr.bf16.mxu0 0
    %1362 = vmatpush1.bf16.msra.mxu0 0
    %1363 = vmatprep.subr.bf16.mxu0 0
    %1364 = vmatpush1.bf16.msra.mxu0 0
    %1365 = vmatprep.mubr.bf16.mxu0 0
    %1366 = vmatmul.mubr.bf16.gmra.mrb[0].mxu0 %v1328
    %v1367 = vpop.f32.mrb[0].mxu0
    %v1368 = vadd.f32 0.0, %v1367
    %v1369 = vpop.f32.mrb[0].mxu0
    %v1370 = vpop.f32.mrb[0].mxu0
    %v1371 = vadd.f32 0.0, %v1370
    %v1372 = vpop.f32.mrb[0].mxu0
    %1373 = vmatprep.mubr.bf16.mxu0 0
    %1374 = vmatmul.mubr.bf16.gmra.mrb[0].mxu0 %v1331
    %v1375 = vpop.f32.mrb[0].mxu0
    %v1376 = vadd.f32 0.0, %v1375
    %v1377 = vpop.f32.mrb[0].mxu0
    %v1378 = vpop.f32.mrb[0].mxu0
    %v1379 = vadd.f32 0.0, %v1378
    %v1380 = vpop.f32.mrb[0].mxu0
    %1381 = vdwg.mxu0
    %v1383 = vsel %vm711, %v1315, 0
    %v1386 = vsel %vm711, %v1316, 0
    %1388 = vmatprep.subr.bf16.mxu0 0
    %1389 = vmatpush1.bf16.msra.mxu0 %v1317
    %1390 = vmatprep.subr.bf16.mxu0 0
    %1391 = vmatpush1.bf16.msra.mxu0 %v1318
    %1392 = vmatprep.subr.bf16.mxu0 0
    %1393 = vmatpush1.bf16.msra.mxu0 0
    %1394 = vmatprep.subr.bf16.mxu0 0
    %1395 = vmatpush1.bf16.msra.mxu0 0
    %1396 = vmatprep.subr.bf16.mxu0 0
    %1397 = vmatpush1.bf16.msra.mxu0 0
    %1398 = vmatprep.subr.bf16.mxu0 0
    %1399 = vmatpush1.bf16.msra.mxu0 0
    %1400 = vmatprep.subr.bf16.mxu0 0
    %1401 = vmatpush1.bf16.msra.mxu0 0
    %1402 = vmatprep.subr.bf16.mxu0 0
    %1403 = vmatpush1.bf16.msra.mxu0 0
    %1404 = vmatprep.subr.bf16.mxu0 0
    %1405 = vmatpush1.bf16.msra.mxu0 0
    %1406 = vmatprep.subr.bf16.mxu0 0
    %1407 = vmatpush1.bf16.msra.mxu0 0
    %1408 = vmatprep.subr.bf16.mxu0 0
    %1409 = vmatpush1.bf16.msra.mxu0 0
    %1410 = vmatprep.subr.bf16.mxu0 0
    %1411 = vmatpush1.bf16.msra.mxu0 0
    %1412 = vmatprep.subr.bf16.mxu0 0
    %1413 = vmatpush1.bf16.msra.mxu0 0
    %1414 = vmatprep.subr.bf16.mxu0 0
    %1415 = vmatpush1.bf16.msra.mxu0 0
    %1416 = vmatprep.subr.bf16.mxu0 0
    %1417 = vmatpush1.bf16.msra.mxu0 0
    %1418 = vmatprep.subr.bf16.mxu0 0
    %1419 = vmatpush1.bf16.msra.mxu0 0
    %1420 = vmatprep.mubr.bf16.mxu0 0
    %1421 = vmatmul.mubr.bf16.gmra.mrb[0].mxu0 %v1383
    %v1422 = vpop.f32.mrb[0].mxu0
    %v1423 = vadd.f32 %v1368, %v1422
    %v1424 = vpop.f32.mrb[0].mxu0
    %v1425 = vpop.f32.mrb[0].mxu0
    %v1426 = vadd.f32 %v1371, %v1425
    %v1427 = vpop.f32.mrb[0].mxu0
    %1428 = vmatprep.mubr.bf16.mxu0 0
    %1429 = vmatmul.mubr.bf16.gmra.mrb[0].mxu0 %v1386
    %v1430 = vpop.f32.mrb[0].mxu0
    %v1431 = vadd.f32 %v1376, %v1430
    %v1432 = vpop.f32.mrb[0].mxu0
    %v1433 = vpop.f32.mrb[0].mxu0
    %v1434 = vadd.f32 %v1379, %v1433
    %v1435 = vpop.f32.mrb[0].mxu0
    %1436 = vdwg.mxu0
    %v1437 = vld [vmem:[#allocation38] sm:$0x1]
    %v1439 = vlaneseq
    %v1440 = vshrl.u32 %v1439, 7
    %v1441 = vsub.s32 0, %v1440
    %v1442 = vrot.slane %v1437, %v1441
    %v1444 = vadd.f32 %v1423, %v1442
    %v1445 = vadd.f32 %v1426, %v1442
    %v1446 = vadd.f32 %v1431, %v1442
    %v1447 = vadd.f32 %v1434, %v1442
    %v1448 = vmax.f32 %v1444, 0.0
    %v1449 = vmax.f32 %v1445, 0.0
    %v1450 = vmax.f32 %v1446, 0.0
    %v1451 = vmax.f32 %v1447, 0.0
    %v1452 = vld [vmem:[#allocation40] sm:$0xff]
    %v1453 = vld [vmem:[#allocation40 + $0x8] sm:$0xff]
    %v1454 = vld [vmem:[#allocation40 + $0x10] sm:$0xff]
    %v1455 = vld [vmem:[#allocation40 + $0x18] sm:$0xff]
    %v1456 = vpack.c.bf16 %v1449, %v1448
    %v1457 = vpack.c.bf16 %v1451, %v1450
    %v1458 = vpack.c.bf16 %v1453, %v1452
    %v1459 = vpack.c.bf16 %v1455, %v1454
    %v1461 = vsel %vm711, %v1456, 0
    %v1464 = vsel %vm711, %v1457, 0
    %1466 = vmatprep.subr.bf16.mxu0 0
    %1467 = vmatpush1.bf16.msra.mxu0 %v1458
    %1468 = vmatprep.subr.bf16.mxu0 0
    %1469 = vmatpush1.bf16.msra.mxu0 %v1459
    %1470 = vmatprep.subr.bf16.mxu0 0
    %1471 = vmatpush1.bf16.msra.mxu0 0
    %1472 = vmatprep.subr.bf16.mxu0 0
    %1473 = vmatpush1.bf16.msra.mxu0 0
    %1474 = vmatprep.subr.bf16.mxu0 0
    %1475 = vmatpush1.bf16.msra.mxu0 0
    %1476 = vmatprep.subr.bf16.mxu0 0
    %1477 = vmatpush1.bf16.msra.mxu0 0
    %1478 = vmatprep.subr.bf16.mxu0 0
    %1479 = vmatpush1.bf16.msra.mxu0 0
    %1480 = vmatprep.subr.bf16.mxu0 0
    %1481 = vmatpush1.bf16.msra.mxu0 0
    %1482 = vmatprep.subr.bf16.mxu0 0
    %1483 = vmatpush1.bf16.msra.mxu0 0
    %1484 = vmatprep.subr.bf16.mxu0 0
    %1485 = vmatpush1.bf16.msra.mxu0 0
    %1486 = vmatprep.subr.bf16.mxu0 0
    %1487 = vmatpush1.bf16.msra.mxu0 0
    %1488 = vmatprep.subr.bf16.mxu0 0
    %1489 = vmatpush1.bf16.msra.mxu0 0
    %1490 = vmatprep.subr.bf16.mxu0 0
    %1491 = vmatpush1.bf16.msra.mxu0 0
    %1492 = vmatprep.subr.bf16.mxu0 0
    %1493 = vmatpush1.bf16.msra.mxu0 0
    %1494 = vmatprep.subr.bf16.mxu0 0
    %1495 = vmatpush1.bf16.msra.mxu0 0
    %1496 = vmatprep.subr.bf16.mxu0 0
    %1497 = vmatpush1.bf16.msra.mxu0 0
    %1498 = vmatprep.mubr.bf16.mxu0 0
    %1499 = vmatmul.mubr.bf16.gmra.mrb[0].mxu0 %v1461
    %v1500 = vpop.f32.mrb[0].mxu0
    %v1501 = vadd.f32 0.0, %v1500
    %v1502 = vpop.f32.mrb[0].mxu0
    %v1503 = vpop.f32.mrb[0].mxu0
    %v1504 = vadd.f32 0.0, %v1503
    %v1505 = vpop.f32.mrb[0].mxu0
    %1506 = vmatprep.mubr.bf16.mxu0 0
    %1507 = vmatmul.mubr.bf16.gmra.mrb[0].mxu0 %v1464
    %v1508 = vpop.f32.mrb[0].mxu0
    %v1509 = vadd.f32 0.0, %v1508
    %v1510 = vpop.f32.mrb[0].mxu0
    %v1511 = vpop.f32.mrb[0].mxu0
    %v1512 = vadd.f32 0.0, %v1511
    %v1513 = vpop.f32.mrb[0].mxu0
    %1514 = vdwg.mxu0
    %v1515 = vadd.f32 %v893, %v1501
    %v1516 = vadd.f32 %v896, %v1504
    %v1517 = vadd.f32 %v901, %v1509
    %v1518 = vadd.f32 %v904, %v1512
    %v1519 = vld [vmem:[#allocation41] sm:$0x1]
    %v1521 = vlaneseq
    %v1522 = vshrl.u32 %v1521, 7
    %v1523 = vsub.s32 0, %v1522
    %v1524 = vrot.slane %v1519, %v1523
    %v1526 = vadd.f32 %v1515, %v1524
    %v1527 = vadd.f32 %v1516, %v1524
    %v1528 = vadd.f32 %v1517, %v1524
    %v1529 = vadd.f32 %v1518, %v1524
    %1530 = vmatprep.subr.bf16.mxu0 0
    %1531 = vmatpush1.bf16.msra.mxu0 %v1212
    %1532 = vmatprep.subr.bf16.mxu0 0
    %1533 = vmatpush1.bf16.msra.mxu0 0
    %1534 = vmatprep.subr.bf16.mxu0 0
    %1535 = vmatpush1.bf16.msra.mxu0 0
    %1536 = vmatprep.subr.bf16.mxu0 0
    %1537 = vmatpush1.bf16.msra.mxu0 0
    %1538 = vmatprep.subr.bf16.mxu0 0
    %1539 = vmatpush1.bf16.msra.mxu0 0
    %1540 = vmatprep.subr.bf16.mxu0 0
    %1541 = vmatpush1.bf16.msra.mxu0 0
    %1542 = vmatprep.subr.bf16.mxu0 0
    %1543 = vmatpush1.bf16.msra.mxu0 0
    %1544 = vmatprep.subr.bf16.mxu0 0
    %1545 = vmatpush1.bf16.msra.mxu0 0
    %1546 = vmatprep.subr.bf16.mxu0 0
    %1547 = vmatpush1.bf16.msra.mxu0 0
    %1548 = vmatprep.subr.bf16.mxu0 0
    %1549 = vmatpush1.bf16.msra.mxu0 0
    %1550 = vmatprep.subr.bf16.mxu0 0
    %1551 = vmatpush1.bf16.msra.mxu0 0
    %1552 = vmatprep.subr.bf16.mxu0 0
    %1553 = vmatpush1.bf16.msra.mxu0 0
    %1554 = vmatprep.subr.bf16.mxu0 0
    %1555 = vmatpush1.bf16.msra.mxu0 0
    %1556 = vmatprep.subr.bf16.mxu0 0
    %1557 = vmatpush1.bf16.msra.mxu0 0
    %1558 = vmatprep.subr.bf16.mxu0 0
    %1559 = vmatpush1.bf16.msra.mxu0 0
    %1560 = vmatprep.subr.bf16.mxu0 0
    %1561 = vmatpush1.bf16.msra.mxu0 0
    %1562 = vmatprep.mubr.bf16.mxu0 0
    %1563 = vmatmul.mubr.bf16.gmra.mrb[0].mxu0 %v908
    %v1564 = vpop.f32.mrb[0].mxu0
    %v1565 = vadd.f32 %v1210, %v1564
    %v1566 = vpop.f32.mrb[0].mxu0
    %v1567 = vpop.f32.mrb[0].mxu0
    %v1568 = vadd.f32 %v1211, %v1567
    %v1569 = vpop.f32.mrb[0].mxu0
    %1570 = vdwg.mxu0
    %v1571 = vld [vmem:[%s33] sm:$0xff]
    %v1572 = vld [vmem:[%s33 + $0x8] sm:$0xff]
    %v1573 = vld [vmem:[%s33 + $0x10] sm:$0xff]
    %v1574 = vld [vmem:[%s33 + $0x18] sm:$0xff]
    %v1575 = vpack.c.bf16 %v1568, %v1565
    %v1576 = vpack.c.bf16 %v1572, %v1571
    %v1577 = vpack.c.bf16 %v1574, %v1573
    %v1578 = vld [vmem:[#allocation20] sm:$0x1]
    %v1580 = vlaneseq
    %v1581 = vshrl.u32 %v1580, 7
    %v1582 = vsub.s32 0, %v1581
    %v1583 = vrot.slane %v1578, %v1582
    %v1586 = vsel %vm711, %v1575, 0
    %1588 = vmatprep.subr.bf16.mxu0 0
    %1589 = vmatpush1.bf16.msra.mxu0 %v1576
    %1590 = vmatprep.subr.bf16.mxu0 0
    %1591 = vmatpush1.bf16.msra.mxu0 %v1577
    %1592 = vmatprep.subr.bf16.mxu0 0
    %1593 = vmatpush1.bf16.msra.mxu0 0
    %1594 = vmatprep.subr.bf16.mxu0 0
    %1595 = vmatpush1.bf16.msra.mxu0 0
    %1596 = vmatprep.subr.bf16.mxu0 0
    %1597 = vmatpush1.bf16.msra.mxu0 0
    %1598 = vmatprep.subr.bf16.mxu0 0
    %1599 = vmatpush1.bf16.msra.mxu0 0
    %1600 = vmatprep.subr.bf16.mxu0 0
    %1601 = vmatpush1.bf16.msra.mxu0 0
    %1602 = vmatprep.subr.bf16.mxu0 0
    %1603 = vmatpush1.bf16.msra.mxu0 0
    %1604 = vmatprep.subr.bf16.mxu0 0
    %1605 = vmatpush1.bf16.msra.mxu0 0
    %1606 = vmatprep.subr.bf16.mxu0 0
    %1607 = vmatpush1.bf16.msra.mxu0 0
    %1608 = vmatprep.subr.bf16.mxu0 0
    %1609 = vmatpush1.bf16.msra.mxu0 0
    %1610 = vmatprep.subr.bf16.mxu0 0
    %1611 = vmatpush1.bf16.msra.mxu0 0
    %1612 = vmatprep.subr.bf16.mxu0 0
    %1613 = vmatpush1.bf16.msra.mxu0 0
    %1614 = vmatprep.subr.bf16.mxu0 0
    %1615 = vmatpush1.bf16.msra.mxu0 0
    %1616 = vmatprep.subr.bf16.mxu0 0
    %1617 = vmatpush1.bf16.msra.mxu0 0
    %1618 = vmatprep.subr.bf16.mxu0 0
    %1619 = vmatpush1.bf16.msra.mxu0 0
    %1620 = vmatprep.mubr.bf16.mxu0 0
    %1621 = vmatmul.mubr.bf16.gmra.mrb[0].mxu0 %v1586
    %v1622 = vpop.f32.mrb[0].mxu0
    %v1623 = vadd.f32 %v1583, %v1622
    %v1624 = vpop.f32.mrb[0].mxu0
    %v1625 = vpop.f32.mrb[0].mxu0
    %v1626 = vadd.f32 %v1583, %v1625
    %v1627 = vpop.f32.mrb[0].mxu0
    %1628 = vdwg.mxu0
    %v1629 = vsel %vm711, %v1623, 0.0
    %v1630 = vsel %vm711, %v1626, 0.0
    %v1631 = vadd.f32 %v1629, %v1630
    %v1632 = vrot.slane %v1631, 4
    %v1633 = vadd.f32 %v1631, %v1632
    %v1634 = vrot.slane %v1633, 2
    %v1635 = vadd.f32 %v1633, %v1634
    %v1636 = vrot.slane %v1635, 1
    %v1637 = vadd.f32 %v1635, %v1636
    %v1638 = vmul.f32 %v1637, %v1018
    %v1639 = vsub.f32 %v1623, %v1638
    %v1640 = vsub.f32 %v1626, %v1638
    %v1641 = vmul.f32 %v1639, %v1639
    %v1642 = vmul.f32 %v1640, %v1640
    %v1643 = vsel %vm711, %v1641, 0.0
    %v1644 = vsel %vm711, %v1642, 0.0
    %v1645 = vadd.f32 %v1643, %v1644
    %v1646 = vrot.slane %v1645, 4
    %v1647 = vadd.f32 %v1645, %v1646
    %v1648 = vrot.slane %v1647, 2
    %v1649 = vadd.f32 %v1647, %v1648
    %v1650 = vrot.slane %v1649, 1
    %v1651 = vadd.f32 %v1649, %v1650
    %v1652 = vmul.f32 %v1651, %v1018
    %v1653 = vadd.f32 %v1652, 1e-05
    %v1654 = vrsqrt.pop %v1653
    %v1655 = vmul.f32 %v1639, %v1654
    %v1656 = vmul.f32 %v1640, %v1654
    %v1657 = vld [vmem:[#allocation22] sm:$0x1]
    %v1659 = vlaneseq
    %v1660 = vshrl.u32 %v1659, 7
    %v1661 = vsub.s32 0, %v1660
    %v1662 = vrot.slane %v1657, %v1661
    %v1664 = vmul.f32 %v1655, %v1662
    %v1665 = vmul.f32 %v1656, %v1662
    %v1666 = vld [vmem:[#allocation23] sm:$0x1]
    %v1668 = vlaneseq
    %v1669 = vshrl.u32 %v1668, 7
    %v1670 = vsub.s32 0, %v1669
    %v1671 = vrot.slane %v1666, %v1670
    %v1673 = vadd.f32 %v1664, %v1671
    %v1674 = vadd.f32 %v1665, %v1671
    %v1675 = vmax.f32 %v1673, 0.0
    %v1676 = vmax.f32 %v1674, 0.0
    %v1677 = vld [vmem:[%s41] sm:$0xff]
    %v1678 = vld [vmem:[%s41 + $0x8] sm:$0xff]
    %v1679 = vld [vmem:[%s41 + $0x10] sm:$0xff]
    %v1680 = vld [vmem:[%s41 + $0x18] sm:$0xff]
    %v1681 = vpack.c.bf16 %v1676, %v1675
    %v1682 = vpack.c.bf16 %v1678, %v1677
    %v1683 = vpack.c.bf16 %v1680, %v1679
    %v1684 = vld [vmem:[#allocation25] sm:$0x1]
    %v1686 = vlaneseq
    %v1687 = vshrl.u32 %v1686, 7
    %v1688 = vsub.s32 0, %v1687
    %v1689 = vrot.slane %v1684, %v1688
    %v1692 = vsel %vm711, %v1681, 0
    %1694 = vmatprep.subr.bf16.mxu0 0
    %1695 = vmatpush1.bf16.msra.mxu0 %v1682
    %1696 = vmatprep.subr.bf16.mxu0 0
    %1697 = vmatpush1.bf16.msra.mxu0 %v1683
    %1698 = vmatprep.subr.bf16.mxu0 0
    %1699 = vmatpush1.bf16.msra.mxu0 0
    %1700 = vmatprep.subr.bf16.mxu0 0
    %1701 = vmatpush1.bf16.msra.mxu0 0
    %1702 = vmatprep.subr.bf16.mxu0 0
    %1703 = vmatpush1.bf16.msra.mxu0 0
    %1704 = vmatprep.subr.bf16.mxu0 0
    %1705 = vmatpush1.bf16.msra.mxu0 0
    %1706 = vmatprep.subr.bf16.mxu0 0
    %1707 = vmatpush1.bf16.msra.mxu0 0
    %1708 = vmatprep.subr.bf16.mxu0 0
    %1709 = vmatpush1.bf16.msra.mxu0 0
    %1710 = vmatprep.subr.bf16.mxu0 0
    %1711 = vmatpush1.bf16.msra.mxu0 0
    %1712 = vmatprep.subr.bf16.mxu0 0
    %1713 = vmatpush1.bf16.msra.mxu0 0
    %1714 = vmatprep.subr.bf16.mxu0 0
    %1715 = vmatpush1.bf16.msra.mxu0 0
    %1716 = vmatprep.subr.bf16.mxu0 0
    %1717 = vmatpush1.bf16.msra.mxu0 0
    %1718 = vmatprep.subr.bf16.mxu0 0
    %1719 = vmatpush1.bf16.msra.mxu0 0
    %1720 = vmatprep.subr.bf16.mxu0 0
    %1721 = vmatpush1.bf16.msra.mxu0 0
    %1722 = vmatprep.subr.bf16.mxu0 0
    %1723 = vmatpush1.bf16.msra.mxu0 0
    %1724 = vmatprep.subr.bf16.mxu0 0
    %1725 = vmatpush1.bf16.msra.mxu0 0
    %1726 = vmatprep.mubr.bf16.mxu0 0
    %1727 = vmatmul.mubr.bf16.gmra.mrb[0].mxu0 %v1692
    %v1728 = vpop.f32.mrb[0].mxu0
    %v1729 = vadd.f32 %v1689, %v1728
    %v1730 = vpop.f32.mrb[0].mxu0
    %v1731 = vpop.f32.mrb[0].mxu0
    %v1732 = vadd.f32 %v1689, %v1731
    %v1733 = vpop.f32.mrb[0].mxu0
    %1734 = vdwg.mxu0
    %v1735 = vsel %vm711, %v1729, 0.0
    %v1736 = vsel %vm711, %v1732, 0.0
    %v1737 = vadd.f32 %v1735, %v1736
    %v1738 = vrot.slane %v1737, 4
    %v1739 = vadd.f32 %v1737, %v1738
    %v1740 = vrot.slane %v1739, 2
    %v1741 = vadd.f32 %v1739, %v1740
    %v1742 = vrot.slane %v1741, 1
    %v1743 = vadd.f32 %v1741, %v1742
    %v1744 = vmul.f32 %v1743, %v1018
    %v1745 = vsub.f32 %v1729, %v1744
    %v1746 = vsub.f32 %v1732, %v1744
    %v1747 = vmul.f32 %v1745, %v1745
    %v1748 = vmul.f32 %v1746, %v1746
    %v1749 = vsel %vm711, %v1747, 0.0
    %v1750 = vsel %vm711, %v1748, 0.0
    %v1751 = vadd.f32 %v1749, %v1750
    %v1752 = vrot.slane %v1751, 4
    %v1753 = vadd.f32 %v1751, %v1752
    %v1754 = vrot.slane %v1753, 2
    %v1755 = vadd.f32 %v1753, %v1754
    %v1756 = vrot.slane %v1755, 1
    %v1757 = vadd.f32 %v1755, %v1756
    %v1758 = vmul.f32 %v1757, %v1018
    %v1759 = vadd.f32 %v1758, 1e-05
    %v1760 = vrsqrt.pop %v1759
    %v1761 = vmul.f32 %v1745, %v1760
    %v1762 = vmul.f32 %v1746, %v1760
    %v1763 = vld [vmem:[#allocation26] sm:$0x1]
    %v1765 = vlaneseq
    %v1766 = vshrl.u32 %v1765, 7
    %v1767 = vsub.s32 0, %v1766
    %v1768 = vrot.slane %v1763, %v1767
    %v1770 = vmul.f32 %v1761, %v1768
    %v1771 = vmul.f32 %v1762, %v1768
    %v1772 = vld [vmem:[#allocation28] sm:$0x1]
    %v1774 = vlaneseq
    %v1775 = vshrl.u32 %v1774, 7
    %v1776 = vsub.s32 0, %v1775
    %v1777 = vrot.slane %v1772, %v1776
    %v1779 = vadd.f32 %v1770, %v1777
    %v1780 = vadd.f32 %v1771, %v1777
    %v1781 = vmax.f32 %v1779, 0.0
    %v1782 = vmax.f32 %v1780, 0.0
    %v1783 = vsel %vm711, %v1781, 0.0
    %v1784 = vsel %vm711, %v1782, 0.0
    %v1785 = vadd.f32 %v1783, %v1784
    %v1786 = vrot.slane %v1785, 4
    %v1787 = vadd.f32 %v1785, %v1786
    %v1788 = vrot.slane %v1787, 2
    %v1789 = vadd.f32 %v1787, %v1788
    %v1790 = vrot.slane %v1789, 1
    %v1791 = vadd.f32 %v1789, %v1790
    %v1792 = vmul.f32 %v1791, %v1018
    %v1793 = vsub.f32 %v1781, %v1792
    %v1794 = vsub.f32 %v1782, %v1792
    %v1795 = vmul.f32 %v1793, %v1793
    %v1796 = vmul.f32 %v1794, %v1794
    %v1797 = vsel %vm711, %v1795, 0.0
    %v1798 = vsel %vm711, %v1796, 0.0
    %v1799 = vadd.f32 %v1797, %v1798
    %v1800 = vrot.slane %v1799, 4
    %v1801 = vadd.f32 %v1799, %v1800
    %v1802 = vrot.slane %v1801, 2
    %v1803 = vadd.f32 %v1801, %v1802
    %v1804 = vrot.slane %v1803, 1
    %v1805 = vadd.f32 %v1803, %v1804
    %v1806 = vmul.f32 %v1805, %v1018
    %v1807 = vadd.f32 %v1806, 1e-05
    %v1808 = vrsqrt.pop %v1807
    %v1809 = vmul.f32 %v1793, %v1808
    %v1810 = vmul.f32 %v1794, %v1808
    %v1811 = vld [vmem:[#allocation29] sm:$0x1]
    %v1813 = vlaneseq
    %v1814 = vshrl.u32 %v1813, 7
    %v1815 = vsub.s32 0, %v1814
    %v1816 = vrot.slane %v1811, %v1815
    %v1818 = vmul.f32 %v1809, %v1816
    %v1819 = vmul.f32 %v1810, %v1816
    %v1820 = vld [vmem:[#allocation31] sm:$0x1]
    %v1822 = vlaneseq
    %v1823 = vshrl.u32 %v1822, 7
    %v1824 = vsub.s32 0, %v1823
    %v1825 = vrot.slane %v1820, %v1824
    %v1827 = vadd.f32 %v1818, %v1825
    %v1828 = vadd.f32 %v1819, %v1825
    %v1829 = vmax.f32 %v1827, 0.0
    %v1830 = vmax.f32 %v1828, 0.0
    %v1831 = vpack.c.bf16 %v1830, %v1829
    %1832 = vmatprep.subr.bf16.mxu0 0
    %1833 = vmatpush1.bf16.msra.mxu0 %v1831
    %1834 = vmatprep.subr.bf16.mxu0 0
    %1835 = vmatpush1.bf16.msra.mxu0 0
    %1836 = vmatprep.subr.bf16.mxu0 0
    %1837 = vmatpush1.bf16.msra.mxu0 0
    %1838 = vmatprep.subr.bf16.mxu0 0
    %1839 = vmatpush1.bf16.msra.mxu0 0
    %1840 = vmatprep.subr.bf16.mxu0 0
    %1841 = vmatpush1.bf16.msra.mxu0 0
    %1842 = vmatprep.subr.bf16.mxu0 0
    %1843 = vmatpush1.bf16.msra.mxu0 0
    %1844 = vmatprep.subr.bf16.mxu0 0
    %1845 = vmatpush1.bf16.msra.mxu0 0
    %1846 = vmatprep.subr.bf16.mxu0 0
    %1847 = vmatpush1.bf16.msra.mxu0 0
    %1848 = vmatprep.subr.bf16.mxu0 0
    %1849 = vmatpush1.bf16.msra.mxu0 0
    %1850 = vmatprep.subr.bf16.mxu0 0
    %1851 = vmatpush1.bf16.msra.mxu0 0
    %1852 = vmatprep.subr.bf16.mxu0 0
    %1853 = vmatpush1.bf16.msra.mxu0 0
    %1854 = vmatprep.subr.bf16.mxu0 0
    %1855 = vmatpush1.bf16.msra.mxu0 0
    %1856 = vmatprep.subr.bf16.mxu0 0
    %1857 = vmatpush1.bf16.msra.mxu0 0
    %1858 = vmatprep.subr.bf16.mxu0 0
    %1859 = vmatpush1.bf16.msra.mxu0 0
    %1860 = vmatprep.subr.bf16.mxu0 0
    %1861 = vmatpush1.bf16.msra.mxu0 0
    %1862 = vmatprep.subr.bf16.mxu0 0
    %1863 = vmatpush1.bf16.msra.mxu0 0
    %1864 = vmatprep.mubr.bf16.mxu0 0
    %1865 = vmatmul.mubr.bf16.gmra.mrb[0].mxu0 %v586
    %v1866 = vpop.f32.mrb[0].mxu0
    %v1867 = vadd.f32 0.0, %v1866
    %v1868 = vpop.f32.mrb[0].mxu0
    %v1869 = vpop.f32.mrb[0].mxu0
    %v1870 = vadd.f32 0.0, %v1869
    %v1871 = vpop.f32.mrb[0].mxu0
    %1872 = vmatprep.mubr.bf16.mxu0 0
    %1873 = vmatmul.mubr.bf16.gmra.mrb[0].mxu0 %v589
    %v1874 = vpop.f32.mrb[0].mxu0
    %v1875 = vadd.f32 0.0, %v1874
    %v1876 = vpop.f32.mrb[0].mxu0
    %v1877 = vpop.f32.mrb[0].mxu0
    %v1878 = vadd.f32 0.0, %v1877
    %v1879 = vpop.f32.mrb[0].mxu0
    %1880 = vdwg.mxu0
    %1881 = vmatprep.subr.bf16.mxu0 0
    %1882 = vmatpush1.bf16.msra.mxu0 %v1831
    %1883 = vmatprep.subr.bf16.mxu0 0
    %1884 = vmatpush1.bf16.msra.mxu0 0
    %1885 = vmatprep.subr.bf16.mxu0 0
    %1886 = vmatpush1.bf16.msra.mxu0 0
    %1887 = vmatprep.subr.bf16.mxu0 0
    %1888 = vmatpush1.bf16.msra.mxu0 0
    %1889 = vmatprep.subr.bf16.mxu0 0
    %1890 = vmatpush1.bf16.msra.mxu0 0
    %1891 = vmatprep.subr.bf16.mxu0 0
    %1892 = vmatpush1.bf16.msra.mxu0 0
    %1893 = vmatprep.subr.bf16.mxu0 0
    %1894 = vmatpush1.bf16.msra.mxu0 0
    %1895 = vmatprep.subr.bf16.mxu0 0
    %1896 = vmatpush1.bf16.msra.mxu0 0
    %1897 = vmatprep.subr.bf16.mxu0 0
    %1898 = vmatpush1.bf16.msra.mxu0 0
    %1899 = vmatprep.subr.bf16.mxu0 0
    %1900 = vmatpush1.bf16.msra.mxu0 0
    %1901 = vmatprep.subr.bf16.mxu0 0
    %1902 = vmatpush1.bf16.msra.mxu0 0
    %1903 = vmatprep.subr.bf16.mxu0 0
    %1904 = vmatpush1.bf16.msra.mxu0 0
    %1905 = vmatprep.subr.bf16.mxu0 0
    %1906 = vmatpush1.bf16.msra.mxu0 0
    %1907 = vmatprep.subr.bf16.mxu0 0
    %1908 = vmatpush1.bf16.msra.mxu0 0
    %1909 = vmatprep.subr.bf16.mxu0 0
    %1910 = vmatpush1.bf16.msra.mxu0 0
    %1911 = vmatprep.subr.bf16.mxu0 0
    %1912 = vmatpush1.bf16.msra.mxu0 0
    %1913 = vmatprep.mubr.bf16.mxu0 0
    %1914 = vmatmul.mubr.bf16.gmra.mrb[0].mxu0 %v641
    %v1915 = vpop.f32.mrb[0].mxu0
    %v1916 = vadd.f32 0.0, %v1915
    %v1917 = vpop.f32.mrb[0].mxu0
    %v1918 = vpop.f32.mrb[0].mxu0
    %v1919 = vadd.f32 0.0, %v1918
    %v1920 = vpop.f32.mrb[0].mxu0
    %1921 = vmatprep.mubr.bf16.mxu0 0
    %1922 = vmatmul.mubr.bf16.gmra.mrb[0].mxu0 %v644
    %v1923 = vpop.f32.mrb[0].mxu0
    %v1924 = vadd.f32 0.0, %v1923
    %v1925 = vpop.f32.mrb[0].mxu0
    %v1926 = vpop.f32.mrb[0].mxu0
    %v1927 = vadd.f32 0.0, %v1926
    %v1928 = vpop.f32.mrb[0].mxu0
    %1929 = vdwg.mxu0
    %v1930 = vld [vmem:[%s73] sm:$0xff]
    %v1931 = vld [vmem:[%s73 + $0x8] sm:$0xff]
    %v1932 = vld [vmem:[%s73 + $0x10] sm:$0xff]
    %v1933 = vld [vmem:[%s73 + $0x18] sm:$0xff]
    %v1934 = vpack.c.bf16 %v1870, %v1867
    %v1935 = vpack.c.bf16 %v1878, %v1875
    %v1936 = vpack.c.bf16 %v1931, %v1930
    %v1937 = vpack.c.bf16 %v1933, %v1932
    %v1938 = vld [vmem:[#allocation43] sm:$0xff]
    %v1939 = vld [vmem:[#allocation43 + $0x8] sm:$0xff]
    %v1940 = vld [vmem:[#allocation43 + $0x10] sm:$0xff]
    %v1941 = vld [vmem:[#allocation43 + $0x18] sm:$0xff]
    %v1942 = vpack.c.bf16 %v1919, %v1916
    %v1943 = vpack.c.bf16 %v1927, %v1924
    %v1944 = vpack.c.bf16 %v1939, %v1938
    %v1945 = vpack.c.bf16 %v1941, %v1940
    %v1947 = vsel %vm711, %v1942, 0
    %v1950 = vsel %vm711, %v1943, 0
    %1952 = vmatprep.subr.bf16.mxu0 0
    %1953 = vmatpush1.bf16.msra.mxu0 %v1944
    %1954 = vmatprep.subr.bf16.mxu0 0
    %1955 = vmatpush1.bf16.msra.mxu0 %v1945
    %1956 = vmatprep.subr.bf16.mxu0 0
    %1957 = vmatpush1.bf16.msra.mxu0 0
    %1958 = vmatprep.subr.bf16.mxu0 0
    %1959 = vmatpush1.bf16.msra.mxu0 0
    %1960 = vmatprep.subr.bf16.mxu0 0
    %1961 = vmatpush1.bf16.msra.mxu0 0
    %1962 = vmatprep.subr.bf16.mxu0 0
    %1963 = vmatpush1.bf16.msra.mxu0 0
    %1964 = vmatprep.subr.bf16.mxu0 0
    %1965 = vmatpush1.bf16.msra.mxu0 0
    %1966 = vmatprep.subr.bf16.mxu0 0
    %1967 = vmatpush1.bf16.msra.mxu0 0
    %1968 = vmatprep.subr.bf16.mxu0 0
    %1969 = vmatpush1.bf16.msra.mxu0 0
    %1970 = vmatprep.subr.bf16.mxu0 0
    %1971 = vmatpush1.bf16.msra.mxu0 0
    %1972 = vmatprep.subr.bf16.mxu0 0
    %1973 = vmatpush1.bf16.msra.mxu0 0
    %1974 = vmatprep.subr.bf16.mxu0 0
    %1975 = vmatpush1.bf16.msra.mxu0 0
    %1976 = vmatprep.subr.bf16.mxu0 0
    %1977 = vmatpush1.bf16.msra.mxu0 0
    %1978 = vmatprep.subr.bf16.mxu0 0
    %1979 = vmatpush1.bf16.msra.mxu0 0
    %1980 = vmatprep.subr.bf16.mxu0 0
    %1981 = vmatpush1.bf16.msra.mxu0 0
    %1982 = vmatprep.subr.bf16.mxu0 0
    %1983 = vmatpush1.bf16.msra.mxu0 0
    %1984 = vmatprep.mubr.bf16.mxu0 0
    %1985 = vmatmul.mubr.bf16.gmra.mrb[0].mxu0 %v1947
    %v1986 = vpop.f32.mrb[0].mxu0
    %v1987 = vadd.f32 0.0, %v1986
    %v1988 = vpop.f32.mrb[0].mxu0
    %v1989 = vpop.f32.mrb[0].mxu0
    %v1990 = vadd.f32 0.0, %v1989
    %v1991 = vpop.f32.mrb[0].mxu0
    %1992 = vmatprep.mubr.bf16.mxu0 0
    %1993 = vmatmul.mubr.bf16.gmra.mrb[0].mxu0 %v1950
    %v1994 = vpop.f32.mrb[0].mxu0
    %v1995 = vadd.f32 0.0, %v1994
    %v1996 = vpop.f32.mrb[0].mxu0
    %v1997 = vpop.f32.mrb[0].mxu0
    %v1998 = vadd.f32 0.0, %v1997
    %v1999 = vpop.f32.mrb[0].mxu0
    %2000 = vdwg.mxu0
    %v2002 = vsel %vm711, %v1934, 0
    %v2005 = vsel %vm711, %v1935, 0
    %2007 = vmatprep.subr.bf16.mxu0 0
    %2008 = vmatpush1.bf16.msra.mxu0 %v1936
    %2009 = vmatprep.subr.bf16.mxu0 0
    %2010 = vmatpush1.bf16.msra.mxu0 %v1937
    %2011 = vmatprep.subr.bf16.mxu0 0
    %2012 = vmatpush1.bf16.msra.mxu0 0
    %2013 = vmatprep.subr.bf16.mxu0 0
    %2014 = vmatpush1.bf16.msra.mxu0 0
    %2015 = vmatprep.subr.bf16.mxu0 0
    %2016 = vmatpush1.bf16.msra.mxu0 0
    %2017 = vmatprep.subr.bf16.mxu0 0
    %2018 = vmatpush1.bf16.msra.mxu0 0
    %2019 = vmatprep.subr.bf16.mxu0 0
    %2020 = vmatpush1.bf16.msra.mxu0 0
    %2021 = vmatprep.subr.bf16.mxu0 0
    %2022 = vmatpush1.bf16.msra.mxu0 0
    %2023 = vmatprep.subr.bf16.mxu0 0
    %2024 = vmatpush1.bf16.msra.mxu0 0
    %2025 = vmatprep.subr.bf16.mxu0 0
    %2026 = vmatpush1.bf16.msra.mxu0 0
    %2027 = vmatprep.subr.bf16.mxu0 0
    %2028 = vmatpush1.bf16.msra.mxu0 0
    %2029 = vmatprep.subr.bf16.mxu0 0
    %2030 = vmatpush1.bf16.msra.mxu0 0
    %2031 = vmatprep.subr.bf16.mxu0 0
    %2032 = vmatpush1.bf16.msra.mxu0 0
    %2033 = vmatprep.subr.bf16.mxu0 0
    %2034 = vmatpush1.bf16.msra.mxu0 0
    %2035 = vmatprep.subr.bf16.mxu0 0
    %2036 = vmatpush1.bf16.msra.mxu0 0
    %2037 = vmatprep.subr.bf16.mxu0 0
    %2038 = vmatpush1.bf16.msra.mxu0 0
    %2039 = vmatprep.mubr.bf16.mxu0 0
    %2040 = vmatmul.mubr.bf16.gmra.mrb[0].mxu0 %v2002
    %v2041 = vpop.f32.mrb[0].mxu0
    %v2042 = vadd.f32 %v1987, %v2041
    %v2043 = vpop.f32.mrb[0].mxu0
    %v2044 = vpop.f32.mrb[0].mxu0
    %v2045 = vadd.f32 %v1990, %v2044
    %v2046 = vpop.f32.mrb[0].mxu0
    %2047 = vmatprep.mubr.bf16.mxu0 0
    %2048 = vmatmul.mubr.bf16.gmra.mrb[0].mxu0 %v2005
    %v2049 = vpop.f32.mrb[0].mxu0
    %v2050 = vadd.f32 %v1995, %v2049
    %v2051 = vpop.f32.mrb[0].mxu0
    %v2052 = vpop.f32.mrb[0].mxu0
    %v2053 = vadd.f32 %v1998, %v2052
    %v2054 = vpop.f32.mrb[0].mxu0
    %2055 = vdwg.mxu0
    %v2056 = vld [vmem:[%s77] sm:$0x1]
    %v2058 = vlaneseq
    %v2059 = vshrl.u32 %v2058, 7
    %v2060 = vsub.s32 0, %v2059
    %v2061 = vrot.slane %v2056, %v2060
    %v2063 = vadd.f32 %v2042, %v2061
    %v2064 = vadd.f32 %v2045, %v2061
    %v2065 = vadd.f32 %v2050, %v2061
    %v2066 = vadd.f32 %v2053, %v2061
    %v2067 = vmax.f32 %v2063, 0.0
    %v2068 = vmax.f32 %v2064, 0.0
    %v2069 = vmax.f32 %v2065, 0.0
    %v2070 = vmax.f32 %v2066, 0.0
    %v2071 = vld [vmem:[#allocation44] sm:$0xff]
    %v2072 = vld [vmem:[#allocation44 + $0x8] sm:$0xff]
    %v2073 = vld [vmem:[#allocation44 + $0x10] sm:$0xff]
    %v2074 = vld [vmem:[#allocation44 + $0x18] sm:$0xff]
    %v2075 = vpack.c.bf16 %v2068, %v2067
    %v2076 = vpack.c.bf16 %v2070, %v2069
    %v2077 = vpack.c.bf16 %v2072, %v2071
    %v2078 = vpack.c.bf16 %v2074, %v2073
    %v2080 = vsel %vm711, %v2075, 0
    %v2083 = vsel %vm711, %v2076, 0
    %2085 = vmatprep.subr.bf16.mxu0 0
    %2086 = vmatpush1.bf16.msra.mxu0 %v2077
    %2087 = vmatprep.subr.bf16.mxu0 0
    %2088 = vmatpush1.bf16.msra.mxu0 %v2078
    %2089 = vmatprep.subr.bf16.mxu0 0
    %2090 = vmatpush1.bf16.msra.mxu0 0
    %2091 = vmatprep.subr.bf16.mxu0 0
    %2092 = vmatpush1.bf16.msra.mxu0 0
    %2093 = vmatprep.subr.bf16.mxu0 0
    %2094 = vmatpush1.bf16.msra.mxu0 0
    %2095 = vmatprep.subr.bf16.mxu0 0
    %2096 = vmatpush1.bf16.msra.mxu0 0
    %2097 = vmatprep.subr.bf16.mxu0 0
    %2098 = vmatpush1.bf16.msra.mxu0 0
    %2099 = vmatprep.subr.bf16.mxu0 0
    %2100 = vmatpush1.bf16.msra.mxu0 0
    %2101 = vmatprep.subr.bf16.mxu0 0
    %2102 = vmatpush1.bf16.msra.mxu0 0
    %2103 = vmatprep.subr.bf16.mxu0 0
    %2104 = vmatpush1.bf16.msra.mxu0 0
    %2105 = vmatprep.subr.bf16.mxu0 0
    %2106 = vmatpush1.bf16.msra.mxu0 0
    %2107 = vmatprep.subr.bf16.mxu0 0
    %2108 = vmatpush1.bf16.msra.mxu0 0
    %2109 = vmatprep.subr.bf16.mxu0 0
    %2110 = vmatpush1.bf16.msra.mxu0 0
    %2111 = vmatprep.subr.bf16.mxu0 0
    %2112 = vmatpush1.bf16.msra.mxu0 0
    %2113 = vmatprep.subr.bf16.mxu0 0
    %2114 = vmatpush1.bf16.msra.mxu0 0
    %2115 = vmatprep.subr.bf16.mxu0 0
    %2116 = vmatpush1.bf16.msra.mxu0 0
    %2117 = vmatprep.mubr.bf16.mxu0 0
    %2118 = vmatmul.mubr.bf16.gmra.mrb[0].mxu0 %v2080
    %v2119 = vpop.f32.mrb[0].mxu0
    %v2120 = vadd.f32 0.0, %v2119
    %v2121 = vpop.f32.mrb[0].mxu0
    %v2122 = vpop.f32.mrb[0].mxu0
    %v2123 = vadd.f32 0.0, %v2122
    %v2124 = vpop.f32.mrb[0].mxu0
    %2125 = vmatprep.mubr.bf16.mxu0 0
    %2126 = vmatmul.mubr.bf16.gmra.mrb[0].mxu0 %v2083
    %v2127 = vpop.f32.mrb[0].mxu0
    %v2128 = vadd.f32 0.0, %v2127
    %v2129 = vpop.f32.mrb[0].mxu0
    %v2130 = vpop.f32.mrb[0].mxu0
    %v2131 = vadd.f32 0.0, %v2130
    %v2132 = vpop.f32.mrb[0].mxu0
    %2133 = vdwg.mxu0
    %v2134 = vadd.f32 %v1526, %v2120
    %v2135 = vadd.f32 %v1527, %v2123
    %v2136 = vadd.f32 %v1528, %v2128
    %v2137 = vadd.f32 %v1529, %v2131
    %v2138 = vld [vmem:[%s81] sm:$0x1]
    %v2140 = vlaneseq
    %v2141 = vshrl.u32 %v2140, 7
    %v2142 = vsub.s32 0, %v2141
    %v2143 = vrot.slane %v2138, %v2142
    %v2145 = vadd.f32 %v2134, %v2143
    %v2146 = vadd.f32 %v2135, %v2143
    %v2147 = vadd.f32 %v2136, %v2143
    %v2148 = vadd.f32 %v2137, %v2143
    %2149 = vst [vmem:[#allocation46] sm:$0xff] %v2145
    %2150 = vst [vmem:[#allocation46 + $0x8] sm:$0xff] %v2146
    %2151 = vst [vmem:[#allocation46 + $0x10] sm:$0xff] %v2147
    %2152 = vst [vmem:[#allocation46 + $0x18] sm:$0xff] %v2148
    // Predicated region
    $region278: #{tpu_custom_call.1} parent=1 // pred_check
      _
    $region279: #{tpu_custom_call.1} parent=1 // pred_check_branch
      %2154 = sbr.rel (0) target = $region281
    $region280: #{tpu_custom_call.1} parent=1 // pred_region
      %s2156 = ssub.s32 512, 512
      %2157 = vsyncadd [#allocation4], %s2156
      %s2158 = sshll.u32 [#allocation46], 4
      %s2159 = int_to_ptr.vmem [resolvable:$true] %s2158
      %2164 = dma.vmem_to_hbm [thread:$0]  %s2159, 512, %s83, [#allocation4], 128, 128, 8
    $region281: #{tpu_custom_call.1} parent=1 // pred_fallthru
      _
    // Predicated region
    $region282: #{tpu_custom_call.1} parent=1 // pred_check
      _
    $region283: #{tpu_custom_call.1} parent=1 // pred_check_branch
      %2166 = sbr.rel (0) target = $region285
    $region284: #{tpu_custom_call.1} parent=1 // pred_region
      %2167 = dma.done [#allocation4], 512
    $region285: #{tpu_custom_call.1} parent=1 // pred_fallthru
      _
    %2168 = vsyncpa [#allocation3], 1
    %2169 = vsyncpa [#allocation6], 1
    %2170 = vsyncpa [#allocation9], 1
    %2171 = vsyncpa [#allocation12], 1
    %2172 = vsyncpa [#allocation15], 1
    %2173 = vsyncpa [#allocation18], 1
    %2174 = vsyncpa [#allocation21], 1
    %2175 = vsyncpa [#allocation24], 1
    %2176 = vsyncpa [#allocation27], 1
    %2177 = vsyncpa [#allocation30], 1
    %2178 = vsyncpa [#allocation33], 1
    %2179 = vsyncpa [#allocation36], 1
    %2180 = vsyncpa [#allocation39], 1
    %2181 = vsyncpa [#allocation42], 1
    %2182 = vsyncpa [#allocation45], 1
    %2183 = vsyncpa [#allocation4], 1

</llo_original>
